<compile_context>
chip_gen: v5e
topology: v5e:2x2
jax: 0.10.0
libtpu: 0.0.40
codegen_flags: <defaults>
</compile_context>

<pallas_src>
import functools
import math

import numpy as np
import jax
import jax.numpy as jnp
from jax import lax
from jax.experimental import pallas as pl
from jax.experimental.pallas import tpu as pltpu

# ----------------------------- model constants ----------------------------- #
C0, C1, C2 = 4, 8, 16          # channels: input, conv1, conv2
H1 = W1 = 16                   # conv1 spatial
H2 = W2 = 8                    # conv2 spatial (after pool1)
H3 = W3 = 4                    # fc-input spatial (after pool2)
D1 = 32                        # fc1 width
NUM_CLASSES = 10
LANES = 128

# Packed weight-slab row offsets (all multiples of 8 for aligned sublane reads)
_B1_OFF, _B2_OFF = 0, 192      # (192,128) conv Toeplitz weights, cols [even w | odd w]
_W1_OFF = 384                  # (256,128) fc1 (flatten-permuted, lane-padded)
_W2_OFF = 640                  # (128,128) fc2 (row/lane zero-padded)
_BIAS1_OFF, _BIAS2_OFF = 768, 776   # (1,128) tiled conv biases
_FB1_OFF, _FB2_OFF = 784, 792       # (1,128) fc biases (lane-padded)
_SLAB_ROWS = 800

# Real weight contractions stay at HIGHEST to match fp32 PyTorch Conv2d/Linear.
_DOT = functools.partial(jnp.dot, preferred_element_type=jnp.float32,
                         precision=lax.Precision.HIGHEST)


# ------------------------------- fused kernel ------------------------------ #

def fused_cnn_kernel(x_ref, w_ref, out_ref,
                     xc1_ref, u1_ref, xc2_ref, u2_ref, zin_ref):
    """Whole CNN forward on a batch block.

    x_ref   : (nb*16, 64)   input, rows (n,h), cols (w,ci)
    w_ref   : (800, 128)    packed weight slab (see offsets above)
    out_ref : (nb, 128)     lane-padded logits (cols >= NUM_CLASSES are zero)
    xc*_ref : (rows, 192)   staged 3-row-tap activations (one per conv)
    u*_ref  : (rows, 64)    width-pooled conv outputs (for strided row pooling)
    zin_ref : (nb, 256)     flattened fc1 input, features ordered (h3, w3, c2)
    """
    nb = x_ref.shape[0] // H1

    def conv_relu_wpool(src, h, xc_ref, u_ref, w_off, bias_off):
        # src: (nb*h, w*cin).  3x3 conv (pad=1) + bias + ReLU + 2x2 width-pool.
        rows, wcin = src.shape
        # Height index within each sample (h is a power of two here: 16 / 8).
        r = lax.broadcasted_iota(jnp.int32, (rows, wcin), 0)
        hh = jnp.bitwise_and(r, h - 1)
        zero_row = jnp.zeros_like(src[:1])
        # Row taps h-1 / h+1 via sublane shift + per-sample border zeroing
        # (VPU/XLU only; equivalent to pltpu.roll(±1, axis=0) + mask).
        up = jnp.where(hh == 0, 0.0,
                       jnp.concatenate([zero_row, src[:-1]], axis=0))
        dn = jnp.where(hh == h - 1, 0.0,
                       jnp.concatenate([src[1:], zero_row], axis=0))
        # Stage the 3 taps at lane offsets -> ONE K=3*wcin MXU contraction.
        xc_ref[:, 0:wcin] = up
        xc_ref[:, wcin:2 * wcin] = src
        xc_ref[:, 2 * wcin:3 * wcin] = dn
        y = _DOT(xc_ref[...], w_ref[w_off:w_off + 3 * wcin, :])   # (rows, 128)
        y = jnp.maximum(y + w_ref[bias_off:bias_off + 1, :], 0.0)
        half = y.shape[1] // 2
        # Width pool: weight columns are [even w | odd w] -> VPU max of halves.
        u_ref[...] = jnp.maximum(y[:, :half], y[:, half:])        # (rows, 64)

    # ---- conv1 + ReLU + 2x2 pool ----
    conv_relu_wpool(x_ref[...], H1, xc1_ref, u1_ref, _B1_OFF, _BIAS1_OFF)
    p1 = jnp.maximum(u1_ref[pl.ds(0, nb * H2, stride=2), :],
                     u1_ref[pl.ds(1, nb * H2, stride=2), :])       # (nb*8, 64)

    # ---- conv2 + ReLU + 2x2 pool (height pool fused with the NCHW flatten) ----
    conv_relu_wpool(p1, H2, xc2_ref, u2_ref, _B2_OFF, _BIAS2_OFF)
    seg = W3 * C2                                                   # 64
    for h3 in range(H3):   # static unroll: 8 strided reads, 4 maxes
        top = u2_ref[pl.ds(2 * h3, nb, stride=H2), :]
        bot = u2_ref[pl.ds(2 * h3 + 1, nb, stride=H2), :]
        zin_ref[:, h3 * seg:(h3 + 1) * seg] = jnp.maximum(top, bot)

    # ---- fc1 + ReLU, fc2 (lane-padded to 128 -> lane-dense output store) ----
    z = jnp.maximum(_DOT(zin_ref[...], w_ref[_W1_OFF:_W1_OFF + H3 * W3 * C2, :])
                    + w_ref[_FB1_OFF:_FB1_OFF + 1, :], 0.0)        # (nb, 128)
    out_ref[...] = (_DOT(z, w_ref[_W2_OFF:_W2_OFF + LANES, :])
                    + w_ref[_FB2_OFF:_FB2_OFF + 1, :])             # (nb, 128)


# --------------------- one-time parameter / operator prep ------------------ #

def _conv_weight_block(w_oihw, width):
    """(3*width*Cin, width*Cout) width-Toeplitz conv weight for one layer.

    Rows: (kh, wi, ci) — matches the staged taps [row h-1 | h | h+1], cols (w,ci).
    Cols: [even output widths | odd output widths], each (w//2, Cout),
          so the 2x2 pool's width-max is a VPU max of the two 64-lane halves.
    """
    cout, cin = int(w_oihw.shape[0]), int(w_oihw.shape[1])
    wo = width // 2
    blk = np.zeros((3 * width * cin, width * cout), np.float32)
    for kh in range(3):
        for w in range(width):
            col = (w % 2) * (wo * cout) + (w // 2) * cout
            for kw in range(3):
                wi = w + kw - 1
                if 0 <= wi < width:
                    row = kh * width * cin + wi * cin
                    blk[row:row + cin, col:col + cout] = w_oihw[:, :, kh, kw].T
    return blk


def prepare_kernel_params(params):
    """Pack ALL weights into one lane-aligned (800, 128) f32 slab (single DMA).

    Batch-independent: run once per set of weights, valid for any batch size.
    """
    p = {k: np.asarray(v, np.float32) for k, v in params.items()}
    slab = np.zeros((_SLAB_ROWS, LANES), np.float32)

    slab[_B1_OFF:_B1_OFF + 3 * W1 * C0] = _conv_weight_block(p["conv1_w"], W1)
    slab[_B2_OFF:_B2_OFF + 3 * W2 * C1] = _conv_weight_block(p["conv2_w"], W2)

    # fc1: fold the PyTorch NCHW flatten (c,h,w) into the kernel's (h,w,c) order.
    wfc = p["fc1_w"].reshape(D1, C2, H3, W3).transpose(2, 3, 1, 0)  # [h,w,c,j]
    slab[_W1_OFF:_W1_OFF + H3 * W3 * C2, :D1] = wfc.reshape(H3 * W3 * C2, D1)
    slab[_W2_OFF:_W2_OFF + D1, :NUM_CLASSES] = p["fc2_w"].T

    slab[_BIAS1_OFF, :] = np.tile(p["conv1_b"], W1)     # (16*8,)  = 128 lanes
    slab[_BIAS2_OFF, :] = np.tile(p["conv2_b"], W2)     # (8*16,)  = 128 lanes
    slab[_FB1_OFF, :D1] = p["fc1_b"]
    slab[_FB2_OFF, :NUM_CLASSES] = p["fc2_b"]
    return jnp.asarray(slab)


# --------------------------------- forward --------------------------------- #

def cnn_forward(x2d, slab):
    """x2d: (N*16, 16*4) f32 input in the (N*H, W*Cin) layout (rows (n,h),
    cols (w,ci)); the NCHW->this relayout is taken at the API boundary so it is
    not re-done per forward.  Returns (N, NUM_CLASSES) logits."""
    n = x2d.shape[0] // H1
    nb = n if n <= 8 else math.gcd(n, 8)     # batch block; grid shards across TCs
    grid = (n // nb,)
    out_pad = pl.pallas_call(
        fused_cnn_kernel,
        out_shape=jax.ShapeDtypeStruct((n, LANES), jnp.float32),
        grid=grid,
        in_specs=[
            pl.BlockSpec((nb * H1, W1 * C0), lambda b: (b, 0)),
            pl.BlockSpec((_SLAB_ROWS, LANES), lambda b: (0, 0)),
        ],
        out_specs=pl.BlockSpec((nb, LANES), lambda b: (b, 0)),
        scratch_shapes=[
            pltpu.VMEM((nb * H1, 3 * W1 * C0), jnp.float32),  # conv1 staged taps
            pltpu.VMEM((nb * H1, W2 * C1), jnp.float32),      # conv1 width-pooled
            pltpu.VMEM((nb * H2, 3 * W2 * C1), jnp.float32),  # conv2 staged taps
            pltpu.VMEM((nb * H2, W3 * C2), jnp.float32),      # conv2 width-pooled
            pltpu.VMEM((nb, H3 * W3 * C2), jnp.float32),      # flattened fc input
        ],
        compiler_params=pltpu.CompilerParams(
            dimension_semantics=("parallel",)),
    )(x2d, slab)
    # Logits are lane-padded to 128 in-kernel for a lane-dense store.
    return out_pad[:, :NUM_CLASSES]


# ----------------------- pure-JAX reference (for check) -------------------- #

def reference_forward(x, params):
    hp = lax.Precision.HIGHEST
    y = lax.conv_general_dilated(
        x, params["conv1_w"], (1, 1), ((1, 1), (1, 1)),
        dimension_numbers=("NCHW", "OIHW", "NCHW"), precision=hp)
    y = jnp.maximum(y + params["conv1_b"].reshape(1, -1, 1, 1), 0.0)
    y = lax.reduce_window(y, -jnp.inf, lax.max, (1, 1, 2, 2), (1, 1, 2, 2), "VALID")
    y = lax.conv_general_dilated(
        y, params["conv2_w"], (1, 1), ((1, 1), (1, 1)),
        dimension_numbers=("NCHW", "OIHW", "NCHW"), precision=hp)
    y = jnp.maximum(y + params["conv2_b"].reshape(1, -1, 1, 1), 0.0)
    y = lax.reduce_window(y, -jnp.inf, lax.max, (1, 1, 2, 2), (1, 1, 2, 2), "VALID")
    y = y.reshape(y.shape[0], -1)
    y = jnp.maximum(jnp.dot(y, params["fc1_w"].T, precision=hp) + params["fc1_b"], 0.0)
    return jnp.dot(y, params["fc2_w"].T, precision=hp) + params["fc2_b"]


# --------------------------- deterministic params --------------------------- #

def init_params(key, num_classes=NUM_CLASSES):
    ks = jax.random.split(key, 8)

    def u(k, shape, fan_in):  # PyTorch-style uniform(-1/sqrt(fan_in), +)
        bound = 1.0 / float(fan_in) ** 0.5
        return jax.random.uniform(k, shape, jnp.float32, -bound, bound)

    return {
        "conv1_w": u(ks[0], (C1, C0, 3, 3), C0 * 9),      # (Cout, Cin, KH, KW)
        "conv1_b": u(ks[1], (C1,), C0 * 9),
        "conv2_w": u(ks[2], (C2, C1, 3, 3), C1 * 9),
        "conv2_b": u(ks[3], (C2,), C1 * 9),
        "fc1_w":   u(ks[4], (D1, C2 * H3 * W3), C2 * H3 * W3),   # (Dout, Din)
        "fc1_b":   u(ks[5], (D1,), C2 * H3 * W3),
        "fc2_w":   u(ks[6], (num_classes, D1), D1),
        "fc2_b":   u(ks[7], (num_classes,), D1),
    }


# ---------------------------------- main ----------------------------------- #

if __name__ == "__main__":
    key = jax.random.PRNGKey(0)
    k_x, k_p = jax.random.split(key)
    batch = 2
    x_nchw = jax.random.normal(k_x, (batch, C0, H1, W1), jnp.float32)
    params = init_params(k_p)

    # One-time, batch-independent weight packing (single-slab DMA at run time).
    slab = prepare_kernel_params(params)
    # API-boundary relayout NCHW -> (N*H, W*Cin); done once, not per forward.
    x2d = jnp.transpose(x_nchw, (0, 2, 3, 1)).reshape(batch * H1, W1 * C0)

    out = jax.block_until_ready(jax.jit(cnn_forward)(x2d, slab))
    assert out.shape == (batch, NUM_CLASSES) and out.dtype == jnp.float32

    ref = reference_forward(x_nchw, params)
    max_err = float(jnp.max(jnp.abs(out - ref)))
    assert max_err < 5e-4, f"mismatch vs pure-JAX reference: {max_err}"
    print("KERNEL_OK")
</pallas_src>

<mosaic_0001>
module attributes {stable_mosaic.version = 11 : i64} {
  func.func @fused_cnn_kernel(%arg0: i32, %arg1: memref<32x64xf32, #tpu.memory_space<vmem>>, %arg2: memref<800x128xf32, #tpu.memory_space<vmem>>, %arg3: memref<2x128xf32, #tpu.memory_space<vmem>>, %arg4: memref<32x192xf32, #tpu.memory_space<vmem>>, %arg5: memref<32x64xf32, #tpu.memory_space<vmem>>, %arg6: memref<16x192xf32, #tpu.memory_space<vmem>>, %arg7: memref<16x64xf32, #tpu.memory_space<vmem>>, %arg8: memref<2x256xf32, #tpu.memory_space<vmem>>) attributes {dimension_semantics = [#tpu.dimension_semantics<parallel>], iteration_bounds = array<i64: 1>, scalar_prefetch = 0 : i64, scratch_operands = 5 : i64, tpu.core_type = #tpu.core_type<tc>, window_params = [{transform_indices = @transform_0, window_bounds = array<i64: 32, 64>}, {pipeline_mode = #tpu.pipeline_mode<synchronous>, transform_indices = @transform_1, window_bounds = array<i64: 800, 128>}, {transform_indices = @transform_2, window_bounds = array<i64: 2, 128>}]} {
    %c0 = arith.constant 0 : index
    %c0_0 = arith.constant 0 : index
    %0 = vector.load %arg1[%c0, %c0_0] : memref<32x64xf32, #tpu.memory_space<vmem>>, vector<32x64xf32>
    %1 = tpu.iota {dimensions = array<i32: 0>} : vector<32x64xi32>
    %c15_i32 = arith.constant 15 : i32
    %2 = vector.broadcast %c15_i32 : i32 to vector<32x64xi32>
    %3 = arith.andi %1, %2 : vector<32x64xi32>
    %cst = arith.constant 0.000000e+00 : f32
    %4 = vector.broadcast %cst : f32 to vector<1x64xf32>
    %c0_i32 = arith.constant 0 : i32
    %5 = vector.broadcast %c0_i32 : i32 to vector<32x64xi32>
    %6 = arith.cmpi eq, %3, %5 : vector<32x64xi32>
    %7 = vector.extract_strided_slice %0 {offsets = [0, 0], sizes = [31, 64], strides = [1, 1]} : vector<32x64xf32> to vector<31x64xf32>
    %8 = tpu.concatenate %4, %7 in 0 : vector<1x64xf32>, vector<31x64xf32> -> vector<32x64xf32>
    %cst_1 = arith.constant 0.000000e+00 : f32
    %9 = vector.broadcast %cst_1 : f32 to vector<32x64xf32>
    %10 = arith.select %6, %9, %8 : vector<32x64xi1>, vector<32x64xf32>
    %c15_i32_2 = arith.constant 15 : i32
    %11 = vector.broadcast %c15_i32_2 : i32 to vector<32x64xi32>
    %12 = arith.cmpi eq, %3, %11 : vector<32x64xi32>
    %13 = vector.extract_strided_slice %0 {offsets = [1, 0], sizes = [31, 64], strides = [1, 1]} : vector<32x64xf32> to vector<31x64xf32>
    %14 = tpu.concatenate %13, %4 in 0 : vector<31x64xf32>, vector<1x64xf32> -> vector<32x64xf32>
    %cst_3 = arith.constant 0.000000e+00 : f32
    %15 = vector.broadcast %cst_3 : f32 to vector<32x64xf32>
    %16 = arith.select %12, %15, %14 : vector<32x64xi1>, vector<32x64xf32>
    %c0_4 = arith.constant 0 : index
    %c0_5 = arith.constant 0 : index
    %17 = vector.load %arg4[%c0_4, %c0_5] : memref<32x192xf32, #tpu.memory_space<vmem>>, vector<32x64xf32>
    tpu.vector_store %arg4[%c0_4, %c0_5], %10 {strides = array<i32>} : memref<32x192xf32, #tpu.memory_space<vmem>>, vector<32x64xf32>,
    %c0_6 = arith.constant 0 : index
    %c64 = arith.constant 64 : index
    %18 = vector.load %arg4[%c0_6, %c64] : memref<32x192xf32, #tpu.memory_space<vmem>>, vector<32x64xf32>
    tpu.vector_store %arg4[%c0_6, %c64], %0 {strides = array<i32>} : memref<32x192xf32, #tpu.memory_space<vmem>>, vector<32x64xf32>,
    %c0_7 = arith.constant 0 : index
    %c128 = arith.constant 128 : index
    %19 = vector.load %arg4[%c0_7, %c128] : memref<32x192xf32, #tpu.memory_space<vmem>>, vector<32x64xf32>
    tpu.vector_store %arg4[%c0_7, %c128], %16 {strides = array<i32>} : memref<32x192xf32, #tpu.memory_space<vmem>>, vector<32x64xf32>,
    %c0_8 = arith.constant 0 : index
    %c0_9 = arith.constant 0 : index
    %20 = vector.load %arg4[%c0_8, %c0_9] : memref<32x192xf32, #tpu.memory_space<vmem>>, vector<32x192xf32>
    %c0_10 = arith.constant 0 : index
    %c0_11 = arith.constant 0 : index
    %21 = vector.load %arg2[%c0_10, %c0_11] : memref<800x128xf32, #tpu.memory_space<vmem>>, vector<192x128xf32>
    %cst_12 = arith.constant dense<0.000000e+00> : vector<32x128xf32>
    %22 = tpu.matmul %20, %21, %cst_12 {dimension_numbers = #tpu.dot_dimension_numbers<[1], [0], [0], [1], [0, 0, 1, 1], [], []>, precision = #tpu.contract_precision<fp32>} : vector<32x192xf32>, vector<192x128xf32>, vector<32x128xf32> -> vector<32x128xf32>
    %c768 = arith.constant 768 : index
    %c0_13 = arith.constant 0 : index
    %23 = vector.load %arg2[%c768, %c0_13] : memref<800x128xf32, #tpu.memory_space<vmem>>, vector<1x128xf32>
    %24 = vector.broadcast %23 : vector<1x128xf32> to vector<32x128xf32>
    %25 = arith.addf %22, %24 : vector<32x128xf32>
    %cst_14 = arith.constant 0.000000e+00 : f32
    %26 = vector.broadcast %cst_14 : f32 to vector<32x128xf32>
    %27 = arith.maximumf %25, %26 : vector<32x128xf32>
    %28 = vector.extract_strided_slice %27 {offsets = [0, 0], sizes = [32, 64], strides = [1, 1]} : vector<32x128xf32> to vector<32x64xf32>
    %29 = vector.extract_strided_slice %27 {offsets = [0, 64], sizes = [32, 64], strides = [1, 1]} : vector<32x128xf32> to vector<32x64xf32>
    %30 = arith.maximumf %28, %29 : vector<32x64xf32>
    %c0_15 = arith.constant 0 : index
    %c0_16 = arith.constant 0 : index
    %31 = vector.load %arg5[%c0_15, %c0_16] : memref<32x64xf32, #tpu.memory_space<vmem>>, vector<32x64xf32>
    tpu.vector_store %arg5[%c0_15, %c0_16], %30 {strides = array<i32>} : memref<32x64xf32, #tpu.memory_space<vmem>>, vector<32x64xf32>,
    %c0_17 = arith.constant 0 : index
    %c0_18 = arith.constant 0 : index
    %32 = tpu.strided_load %arg5[%c0_17, %c0_18] {strides = array<i32: 2, 1>} : memref<32x64xf32, #tpu.memory_space<vmem>>, vector<16x64xf32>
    %c1 = arith.constant 1 : index
    %c0_19 = arith.constant 0 : index
    %33 = tpu.strided_load %arg5[%c1, %c0_19] {strides = array<i32: 2, 1>} : memref<32x64xf32, #tpu.memory_space<vmem>>, vector<16x64xf32>
    %34 = arith.maximumf %32, %33 : vector<16x64xf32>
    %35 = tpu.iota {dimensions = array<i32: 0>} : vector<16x64xi32>
    %c7_i32 = arith.constant 7 : i32
    %36 = vector.broadcast %c7_i32 : i32 to vector<16x64xi32>
    %37 = arith.andi %35, %36 : vector<16x64xi32>
    %cst_20 = arith.constant 0.000000e+00 : f32
    %38 = vector.broadcast %cst_20 : f32 to vector<1x64xf32>
    %c0_i32_21 = arith.constant 0 : i32
    %39 = vector.broadcast %c0_i32_21 : i32 to vector<16x64xi32>
    %40 = arith.cmpi eq, %37, %39 : vector<16x64xi32>
    %41 = vector.extract_strided_slice %34 {offsets = [0, 0], sizes = [15, 64], strides = [1, 1]} : vector<16x64xf32> to vector<15x64xf32>
    %42 = tpu.concatenate %38, %41 in 0 : vector<1x64xf32>, vector<15x64xf32> -> vector<16x64xf32>
    %cst_22 = arith.constant 0.000000e+00 : f32
    %43 = vector.broadcast %cst_22 : f32 to vector<16x64xf32>
    %44 = arith.select %40, %43, %42 : vector<16x64xi1>, vector<16x64xf32>
    %c7_i32_23 = arith.constant 7 : i32
    %45 = vector.broadcast %c7_i32_23 : i32 to vector<16x64xi32>
    %46 = arith.cmpi eq, %37, %45 : vector<16x64xi32>
    %47 = vector.extract_strided_slice %34 {offsets = [1, 0], sizes = [15, 64], strides = [1, 1]} : vector<16x64xf32> to vector<15x64xf32>
    %48 = tpu.concatenate %47, %38 in 0 : vector<15x64xf32>, vector<1x64xf32> -> vector<16x64xf32>
    %cst_24 = arith.constant 0.000000e+00 : f32
    %49 = vector.broadcast %cst_24 : f32 to vector<16x64xf32>
    %50 = arith.select %46, %49, %48 : vector<16x64xi1>, vector<16x64xf32>
    %c0_25 = arith.constant 0 : index
    %c0_26 = arith.constant 0 : index
    %51 = vector.load %arg6[%c0_25, %c0_26] : memref<16x192xf32, #tpu.memory_space<vmem>>, vector<16x64xf32>
    tpu.vector_store %arg6[%c0_25, %c0_26], %44 {strides = array<i32>} : memref<16x192xf32, #tpu.memory_space<vmem>>, vector<16x64xf32>,
    %c0_27 = arith.constant 0 : index
    %c64_28 = arith.constant 64 : index
    %52 = vector.load %arg6[%c0_27, %c64_28] : memref<16x192xf32, #tpu.memory_space<vmem>>, vector<16x64xf32>
    tpu.vector_store %arg6[%c0_27, %c64_28], %34 {strides = array<i32>} : memref<16x192xf32, #tpu.memory_space<vmem>>, vector<16x64xf32>,
    %c0_29 = arith.constant 0 : index
    %c128_30 = arith.constant 128 : index
    %53 = vector.load %arg6[%c0_29, %c128_30] : memref<16x192xf32, #tpu.memory_space<vmem>>, vector<16x64xf32>
    tpu.vector_store %arg6[%c0_29, %c128_30], %50 {strides = array<i32>} : memref<16x192xf32, #tpu.memory_space<vmem>>, vector<16x64xf32>,
    %c0_31 = arith.constant 0 : index
    %c0_32 = arith.constant 0 : index
    %54 = vector.load %arg6[%c0_31, %c0_32] : memref<16x192xf32, #tpu.memory_space<vmem>>, vector<16x192xf32>
    %c192 = arith.constant 192 : index
    %c0_33 = arith.constant 0 : index
    %55 = vector.load %arg2[%c192, %c0_33] : memref<800x128xf32, #tpu.memory_space<vmem>>, vector<192x128xf32>
    %cst_34 = arith.constant dense<0.000000e+00> : vector<16x128xf32>
    %56 = tpu.matmul %54, %55, %cst_34 {dimension_numbers = #tpu.dot_dimension_numbers<[1], [0], [0], [1], [0, 0, 1, 1], [], []>, precision = #tpu.contract_precision<fp32>} : vector<16x192xf32>, vector<192x128xf32>, vector<16x128xf32> -> vector<16x128xf32>
    %c776 = arith.constant 776 : index
    %c0_35 = arith.constant 0 : index
    %57 = vector.load %arg2[%c776, %c0_35] : memref<800x128xf32, #tpu.memory_space<vmem>>, vector<1x128xf32>
    %58 = vector.broadcast %57 : vector<1x128xf32> to vector<16x128xf32>
    %59 = arith.addf %56, %58 : vector<16x128xf32>
    %cst_36 = arith.constant 0.000000e+00 : f32
    %60 = vector.broadcast %cst_36 : f32 to vector<16x128xf32>
    %61 = arith.maximumf %59, %60 : vector<16x128xf32>
    %62 = vector.extract_strided_slice %61 {offsets = [0, 0], sizes = [16, 64], strides = [1, 1]} : vector<16x128xf32> to vector<16x64xf32>
    %63 = vector.extract_strided_slice %61 {offsets = [0, 64], sizes = [16, 64], strides = [1, 1]} : vector<16x128xf32> to vector<16x64xf32>
    %64 = arith.maximumf %62, %63 : vector<16x64xf32>
    %c0_37 = arith.constant 0 : index
    %c0_38 = arith.constant 0 : index
    %65 = vector.load %arg7[%c0_37, %c0_38] : memref<16x64xf32, #tpu.memory_space<vmem>>, vector<16x64xf32>
    tpu.vector_store %arg7[%c0_37, %c0_38], %64 {strides = array<i32>} : memref<16x64xf32, #tpu.memory_space<vmem>>, vector<16x64xf32>,
    %c0_39 = arith.constant 0 : index
    %c0_40 = arith.constant 0 : index
    %66 = tpu.strided_load %arg7[%c0_39, %c0_40] {strides = array<i32: 8, 1>} : memref<16x64xf32, #tpu.memory_space<vmem>>, vector<2x64xf32>
    %c1_41 = arith.constant 1 : index
    %c0_42 = arith.constant 0 : index
    %67 = tpu.strided_load %arg7[%c1_41, %c0_42] {strides = array<i32: 8, 1>} : memref<16x64xf32, #tpu.memory_space<vmem>>, vector<2x64xf32>
    %68 = arith.maximumf %66, %67 : vector<2x64xf32>
    %c0_43 = arith.constant 0 : index
    %c0_44 = arith.constant 0 : index
    %69 = vector.load %arg8[%c0_43, %c0_44] : memref<2x256xf32, #tpu.memory_space<vmem>>, vector<2x64xf32>
    tpu.vector_store %arg8[%c0_43, %c0_44], %68 {strides = array<i32>} : memref<2x256xf32, #tpu.memory_space<vmem>>, vector<2x64xf32>,
    %c2 = arith.constant 2 : index
    %c0_45 = arith.constant 0 : index
    %70 = tpu.strided_load %arg7[%c2, %c0_45] {strides = array<i32: 8, 1>} : memref<16x64xf32, #tpu.memory_space<vmem>>, vector<2x64xf32>
    %c3 = arith.constant 3 : index
    %c0_46 = arith.constant 0 : index
    %71 = tpu.strided_load %arg7[%c3, %c0_46] {strides = array<i32: 8, 1>} : memref<16x64xf32, #tpu.memory_space<vmem>>, vector<2x64xf32>
    %72 = arith.maximumf %70, %71 : vector<2x64xf32>
    %c0_47 = arith.constant 0 : index
    %c64_48 = arith.constant 64 : index
    %73 = vector.load %arg8[%c0_47, %c64_48] : memref<2x256xf32, #tpu.memory_space<vmem>>, vector<2x64xf32>
    tpu.vector_store %arg8[%c0_47, %c64_48], %72 {strides = array<i32>} : memref<2x256xf32, #tpu.memory_space<vmem>>, vector<2x64xf32>,
    %c4 = arith.constant 4 : index
    %c0_49 = arith.constant 0 : index
    %74 = tpu.strided_load %arg7[%c4, %c0_49] {strides = array<i32: 8, 1>} : memref<16x64xf32, #tpu.memory_space<vmem>>, vector<2x64xf32>
    %c5 = arith.constant 5 : index
    %c0_50 = arith.constant 0 : index
    %75 = tpu.strided_load %arg7[%c5, %c0_50] {strides = array<i32: 8, 1>} : memref<16x64xf32, #tpu.memory_space<vmem>>, vector<2x64xf32>
    %76 = arith.maximumf %74, %75 : vector<2x64xf32>
    %c0_51 = arith.constant 0 : index
    %c128_52 = arith.constant 128 : index
    %77 = vector.load %arg8[%c0_51, %c128_52] : memref<2x256xf32, #tpu.memory_space<vmem>>, vector<2x64xf32>
    tpu.vector_store %arg8[%c0_51, %c128_52], %76 {strides = array<i32>} : memref<2x256xf32, #tpu.memory_space<vmem>>, vector<2x64xf32>,
    %c6 = arith.constant 6 : index
    %c0_53 = arith.constant 0 : index
    %78 = tpu.strided_load %arg7[%c6, %c0_53] {strides = array<i32: 8, 1>} : memref<16x64xf32, #tpu.memory_space<vmem>>, vector<2x64xf32>
    %c7 = arith.constant 7 : index
    %c0_54 = arith.constant 0 : index
    %79 = tpu.strided_load %arg7[%c7, %c0_54] {strides = array<i32: 8, 1>} : memref<16x64xf32, #tpu.memory_space<vmem>>, vector<2x64xf32>
    %80 = arith.maximumf %78, %79 : vector<2x64xf32>
    %c0_55 = arith.constant 0 : index
    %c192_56 = arith.constant 192 : index
    %81 = vector.load %arg8[%c0_55, %c192_56] : memref<2x256xf32, #tpu.memory_space<vmem>>, vector<2x64xf32>
    tpu.vector_store %arg8[%c0_55, %c192_56], %80 {strides = array<i32>} : memref<2x256xf32, #tpu.memory_space<vmem>>, vector<2x64xf32>,
    %c0_57 = arith.constant 0 : index
    %c0_58 = arith.constant 0 : index
    %82 = vector.load %arg8[%c0_57, %c0_58] : memref<2x256xf32, #tpu.memory_space<vmem>>, vector<2x256xf32>
    %c384 = arith.constant 384 : index
    %c0_59 = arith.constant 0 : index
    %83 = vector.load %arg2[%c384, %c0_59] : memref<800x128xf32, #tpu.memory_space<vmem>>, vector<256x128xf32>
    %cst_60 = arith.constant dense<0.000000e+00> : vector<2x128xf32>
    %84 = tpu.matmul %82, %83, %cst_60 {dimension_numbers = #tpu.dot_dimension_numbers<[1], [0], [0], [1], [0, 0, 1, 1], [], []>, precision = #tpu.contract_precision<fp32>} : vector<2x256xf32>, vector<256x128xf32>, vector<2x128xf32> -> vector<2x128xf32>
    %c784 = arith.constant 784 : index
    %c0_61 = arith.constant 0 : index
    %85 = vector.load %arg2[%c784, %c0_61] : memref<800x128xf32, #tpu.memory_space<vmem>>, vector<1x128xf32>
    %86 = vector.broadcast %85 : vector<1x128xf32> to vector<2x128xf32>
    %87 = arith.addf %84, %86 : vector<2x128xf32>
    %cst_62 = arith.constant 0.000000e+00 : f32
    %88 = vector.broadcast %cst_62 : f32 to vector<2x128xf32>
    %89 = arith.maximumf %87, %88 : vector<2x128xf32>
    %c640 = arith.constant 640 : index
    %c0_63 = arith.constant 0 : index
    %90 = vector.load %arg2[%c640, %c0_63] : memref<800x128xf32, #tpu.memory_space<vmem>>, vector<128x128xf32>
    %cst_64 = arith.constant dense<0.000000e+00> : vector<2x128xf32>
    %91 = tpu.matmul %89, %90, %cst_64 {dimension_numbers = #tpu.dot_dimension_numbers<[1], [0], [0], [1], [0, 0, 1, 1], [], []>, precision = #tpu.contract_precision<fp32>} : vector<2x128xf32>, vector<128x128xf32>, vector<2x128xf32> -> vector<2x128xf32>
    %c792 = arith.constant 792 : index
    %c0_65 = arith.constant 0 : index
    %92 = vector.load %arg2[%c792, %c0_65] : memref<800x128xf32, #tpu.memory_space<vmem>>, vector<1x128xf32>
    %93 = vector.broadcast %92 : vector<1x128xf32> to vector<2x128xf32>
    %94 = arith.addf %91, %93 : vector<2x128xf32>
    %c0_66 = arith.constant 0 : index
    %c0_67 = arith.constant 0 : index
    %95 = vector.load %arg3[%c0_66, %c0_67] : memref<2x128xf32, #tpu.memory_space<vmem>>, vector<2x128xf32>
    tpu.vector_store %arg3[%c0_66, %c0_67], %94 {strides = array<i32>} : memref<2x128xf32, #tpu.memory_space<vmem>>, vector<2x128xf32>,
    return
  }
  func.func @transform_0(%arg0: i32) -> (i32, i32) {
    %c0_i32 = arith.constant 0 : i32
    %c0_i32_0 = arith.constant 0 : i32
    return %arg0, %c0_i32 : i32, i32
  }
  func.func @transform_1(%arg0: i32) -> (i32, i32) {
    %c0_i32 = arith.constant 0 : i32
    %c0_i32_0 = arith.constant 0 : i32
    %c0_i32_1 = arith.constant 0 : i32
    return %c0_i32, %c0_i32_0 : i32, i32
  }
  func.func @transform_2(%arg0: i32) -> (i32, i32) {
    %c0_i32 = arith.constant 0 : i32
    %c0_i32_0 = arith.constant 0 : i32
    return %arg0, %c0_i32 : i32, i32
  }
}

</mosaic_0001>

<llo_original>
// kernel: cnn_forward.1
$region0: #{cnn_forward.1}
  #allocation0 [shape = 'u32[]', space=smem, size = 0x4, offset = 0x4, fixed_abs, tag = 'smem constant byte address 0x4 - core index']
  #allocation1 [shape = 'u32[72,128]{1,0:T(1,128)}', space=vmem, size = 0x9000, scoped, tag = 'internal scratch']
  #allocation2 [shape = 'f32[32,192]{1,0:T(8,128)}', space=vmem, size = 0x8000, scoped, tag = 'scratch operand']
  #allocation3 [shape = 'f32[32,64]{1,0:T(8,128)}', space=vmem, size = 0x4000, scoped, tag = 'scratch operand']
  #allocation4 [shape = 'f32[16,192]{1,0:T(8,128)}', space=vmem, size = 0x4000, scoped, tag = 'scratch operand']
  #allocation5 [shape = 'f32[16,64]{1,0:T(8,128)}', space=vmem, size = 0x2000, scoped, tag = 'scratch operand']
  #allocation6 [shape = 'f32[2,256]{1,0:T(2,128)}', space=vmem, size = 0x800, scoped, tag = 'scratch operand']
  %s0 = inlined_call_operand.hbm [shape: f32[32,64], index: 0, kind: input, shape index: {}]
  %s1 = inlined_call_operand.hbm [shape: f32[800,128], index: 1, kind: input, shape index: {}]
  %s2 = inlined_call_operand.hbm [shape: f32[2,128], index: 2, kind: output, shape index: {}]
  %s3 = sld [smem:[#allocation0]]
  $region26: #{cnn_forward.1} parent=0
    _
  %s5 = ssub.s32 1, %s3
  %s6 = scalar_select 0, %s5, %s3
  $region1: #{cnn_forward.1} parent=0
    #allocation7 [shape = 'u8[16384]{0}', space=vmem, size = 0x4000, scoped, tag = 'input window, operand 0, single buffered']
    #allocation8 [shape = 's32[1]{0}', space=sflag, size = 0x4, scoped, tag = 'scoped memory for cnn_forward.1']
    #allocation9 [shape = 's32[1]{0}', space=sflag, size = 0x4, scoped, tag = 'scoped memory for cnn_forward.1']
    #allocation10 [shape = 'u8[409600]{0}', space=vmem, size = 0x64000, scoped, tag = 'input window, operand 1, single buffered']
    #allocation11 [shape = 's32[1]{0}', space=sflag, size = 0x4, scoped, tag = 'scoped memory for cnn_forward.1']
    #allocation12 [shape = 'u8[1024]{0}', space=vmem, size = 0x400, scoped, tag = 'output window, operand 0, single buffered']
    %7 = vsyncpa [#allocation8], 0
    %8 = vsyncpa [#allocation11], 0
    %9 = vsyncpa [#allocation9], 0
    // Predicated region
    $region2: #{cnn_forward.1} parent=1 // pred_check
      _
    $region3: #{cnn_forward.1} parent=1 // pred_check_branch
      %11 = sbr.rel (0) target = $region5
    $region4: #{cnn_forward.1} parent=1 // pred_region
      %13 = vsyncadd [#allocation8], 0
      %s14 = sshll.u32 %s0, 4
      %s15 = int_to_ptr.hbm [resolvable:$true] %s14
      %s16 = sshll.u32 [#allocation7], 4
      %s17 = int_to_ptr.vmem [resolvable:$true] %s16
      %22 = dma.hbm_to_vmem [thread:$0]  %s15, 512, %s17, [#allocation8], 128, 128, 8
    $region5: #{cnn_forward.1} parent=1 // pred_fallthru
      _
    // Predicated region
    $region6: #{cnn_forward.1} parent=1 // pred_check
      _
    $region7: #{cnn_forward.1} parent=1 // pred_check_branch
      %24 = sbr.rel (0) target = $region9
    $region8: #{cnn_forward.1} parent=1 // pred_region
      %26 = vsyncadd [#allocation11], 0
      %s27 = sshll.u32 %s1, 4
      %s28 = int_to_ptr.hbm [resolvable:$true] %s27
      %s29 = sshll.u32 [#allocation10], 4
      %s30 = int_to_ptr.vmem [resolvable:$true] %s29
      %35 = dma.hbm_to_vmem [thread:$0]  %s28, 12800, %s30, [#allocation11], 128, 128, 8
    $region9: #{cnn_forward.1} parent=1 // pred_fallthru
      _
    // Predicated region
    $region10: #{cnn_forward.1} parent=1 // pred_check
      _
    $region11: #{cnn_forward.1} parent=1 // pred_check_branch
      %37 = sbr.rel (0) target = $region13
    $region12: #{cnn_forward.1} parent=1 // pred_region
      %39 = dma.done [#allocation8], 512
    $region13: #{cnn_forward.1} parent=1 // pred_fallthru
      _
    // Predicated region
    $region14: #{cnn_forward.1} parent=1 // pred_check
      _
    $region15: #{cnn_forward.1} parent=1 // pred_check_branch
      %41 = sbr.rel (0) target = $region17
    $region16: #{cnn_forward.1} parent=1 // pred_region
      %43 = dma.done [#allocation11], 12800
    $region17: #{cnn_forward.1} parent=1 // pred_fallthru
      _
    %v44 = vld [vmem:[#allocation7] sm:$0xff]
    %v45 = vld [vmem:[#allocation7 + $0x8] sm:$0xff]
    %v46 = vld [vmem:[#allocation7 + $0x10] sm:$0xff]
    %v47 = vld [vmem:[#allocation7 + $0x18] sm:$0xff]
    %v48 = vlaneseq
    %v49 = vshrl.u32 %v48, 7
    %v50 = vadd.s32 %v49, 8
    %v51 = vadd.s32 %v49, 16
    %v52 = vadd.s32 %v49, 24
    %v53 = vand.u32 %v49, 15
    %v54 = vand.u32 %v50, 15
    %v55 = vand.u32 %v51, 15
    %v56 = vand.u32 %v52, 15
    %vm57 = vcmp.eq.s32.totalorder %v53, 0
    %vm58 = vcmp.eq.s32.totalorder %v54, 0
    %vm59 = vcmp.eq.s32.totalorder %v55, 0
    %vm60 = vcmp.eq.s32.totalorder %v56, 0
    %vm65 = vcmask 1040384
    %v66 = vrot.slane %v44, 7
    %v67 = vrot.slane %v45, 7
    %v68 = vsel %vm65, %v66, %v67
    %v69 = vrot.slane %v46, 7
    %v70 = vsel %vm65, %v67, %v69
    %v71 = vrot.slane %v47, 7
    %v72 = vsel %vm65, %v69, %v71
    %v77 = vsel %vm65, 0.0, %v66
    %v78 = vsel %vm57, 0.0, %v77
    %v79 = vsel %vm58, 0.0, %v68
    %v80 = vsel %vm59, 0.0, %v70
    %v81 = vsel %vm60, 0.0, %v72
    %vm82 = vcmp.eq.s32.totalorder %v53, 15
    %vm83 = vcmp.eq.s32.totalorder %v54, 15
    %vm84 = vcmp.eq.s32.totalorder %v55, 15
    %vm85 = vcmp.eq.s32.totalorder %v56, 15
    %vm86 = vcmask 1046528
    %v87 = vrot.slane %v44, 1
    %v88 = vrot.slane %v45, 1
    %v89 = vsel %vm86, %v87, %v88
    %v90 = vrot.slane %v46, 1
    %v91 = vsel %vm86, %v88, %v90
    %v92 = vrot.slane %v47, 1
    %v93 = vsel %vm86, %v90, %v92
    %v98 = vsel %vm86, %v92, 0.0
    %v99 = vsel %vm82, 0.0, %v89
    %v100 = vsel %vm83, 0.0, %v91
    %v101 = vsel %vm84, 0.0, %v93
    %v102 = vsel %vm85, 0.0, %v98
    %vm103 = vcmask 523264
    %104 = vst.msk [vmem:[#allocation2] sm:$0xff] %vm103, %v78
    %105 = vst.msk [vmem:[#allocation2 + $0x10] sm:$0xff] %vm103, %v79
    %106 = vst.msk [vmem:[#allocation2 + $0x20] sm:$0xff] %vm103, %v80
    %107 = vst.msk [vmem:[#allocation2 + $0x30] sm:$0xff] %vm103, %v81
    %108 = vrot.lane.b32.xlu0 %v44, 64
    %v109 = vpop.permute.xlu0 %108
    %110 = vrot.lane.b32.xlu0 %v45, 64
    %v111 = vpop.permute.xlu0 %110
    %112 = vrot.lane.b32.xlu0 %v46, 64
    %v113 = vpop.permute.xlu0 %112
    %114 = vrot.lane.b32.xlu0 %v47, 64
    %v115 = vpop.permute.xlu0 %114
    %vm120 = vcmask 1048064
    %121 = vst.msk [vmem:[#allocation2] sm:$0xff] %vm120, %v109
    %122 = vst.msk [vmem:[#allocation2 + $0x10] sm:$0xff] %vm120, %v111
    %123 = vst.msk [vmem:[#allocation2 + $0x20] sm:$0xff] %vm120, %v113
    %124 = vst.msk [vmem:[#allocation2 + $0x30] sm:$0xff] %vm120, %v115
    %125 = vst.msk [vmem:[#allocation2 + $0x8] sm:$0xff] %vm103, %v99
    %126 = vst.msk [vmem:[#allocation2 + $0x18] sm:$0xff] %vm103, %v100
    %127 = vst.msk [vmem:[#allocation2 + $0x28] sm:$0xff] %vm103, %v101
    %128 = vst.msk [vmem:[#allocation2 + $0x38] sm:$0xff] %vm103, %v102
    %v129 = vld [vmem:[#allocation2] sm:$0xff]
    %v130 = vld [vmem:[#allocation2 + $0x8] sm:$0xff]
    %v131 = vld [vmem:[#allocation2 + $0x10] sm:$0xff]
    %v132 = vld [vmem:[#allocation2 + $0x18] sm:$0xff]
    %v133 = vld [vmem:[#allocation2 + $0x20] sm:$0xff]
    %v134 = vld [vmem:[#allocation2 + $0x28] sm:$0xff]
    %v135 = vld [vmem:[#allocation2 + $0x30] sm:$0xff]
    %v136 = vld [vmem:[#allocation2 + $0x38] sm:$0xff]
    %v137 = vld [vmem:[#allocation10] sm:$0xff]
    %v138 = vld [vmem:[#allocation10 + $0x8] sm:$0xff]
    %v139 = vld [vmem:[#allocation10 + $0x10] sm:$0xff]
    %v140 = vld [vmem:[#allocation10 + $0x18] sm:$0xff]
    %v141 = vld [vmem:[#allocation10 + $0x20] sm:$0xff]
    %v142 = vld [vmem:[#allocation10 + $0x28] sm:$0xff]
    %v143 = vld [vmem:[#allocation10 + $0x30] sm:$0xff]
    %v144 = vld [vmem:[#allocation10 + $0x38] sm:$0xff]
    %v145 = vld [vmem:[#allocation10 + $0x40] sm:$0xff]
    %v146 = vld [vmem:[#allocation10 + $0x48] sm:$0xff]
    %v147 = vld [vmem:[#allocation10 + $0x50] sm:$0xff]
    %v148 = vld [vmem:[#allocation10 + $0x58] sm:$0xff]
    %v149 = vld [vmem:[#allocation10 + $0x60] sm:$0xff]
    %v150 = vld [vmem:[#allocation10 + $0x68] sm:$0xff]
    %v151 = vld [vmem:[#allocation10 + $0x70] sm:$0xff]
    %v152 = vld [vmem:[#allocation10 + $0x78] sm:$0xff]
    %v153 = vld [vmem:[#allocation10 + $0x80] sm:$0xff]
    %v154 = vld [vmem:[#allocation10 + $0x88] sm:$0xff]
    %v155 = vld [vmem:[#allocation10 + $0x90] sm:$0xff]
    %v156 = vld [vmem:[#allocation10 + $0x98] sm:$0xff]
    %v157 = vld [vmem:[#allocation10 + $0xa0] sm:$0xff]
    %v158 = vld [vmem:[#allocation10 + $0xa8] sm:$0xff]
    %v159 = vld [vmem:[#allocation10 + $0xb0] sm:$0xff]
    %v160 = vld [vmem:[#allocation10 + $0xb8] sm:$0xff]
    %v161 = vld [vmem:[#allocation10 + $0x300] sm:$0x1]
    %v162 = vperm.slane %v161, 0
    %v164 = vsel %vm103, %v130, 0
    %v167 = vsel %vm103, %v132, 0
    %v170 = vsel %vm103, %v134, 0
    %v173 = vsel %vm103, %v136, 0
    %v175 = vand.u32 %v152, 4294901760
    %176 = vmatpush.msra.mxu0 %v175
    %v177 = vand.u32 %v151, 4294901760
    %178 = vmatpush.msra.mxu0 %v177
    %v179 = vand.u32 %v150, 4294901760
    %180 = vmatpush.msra.mxu0 %v179
    %v181 = vand.u32 %v149, 4294901760
    %182 = vmatpush.msra.mxu0 %v181
    %v183 = vand.u32 %v148, 4294901760
    %184 = vmatpush.msra.mxu0 %v183
    %v185 = vand.u32 %v147, 4294901760
    %186 = vmatpush.msra.mxu0 %v185
    %v187 = vand.u32 %v146, 4294901760
    %188 = vmatpush.msra.mxu0 %v187
    %v189 = vand.u32 %v145, 4294901760
    %190 = vmatpush.msra.mxu0 %v189
    %v191 = vand.u32 %v144, 4294901760
    %192 = vmatpush.msra.mxu0 %v191
    %v193 = vand.u32 %v143, 4294901760
    %194 = vmatpush.msra.mxu0 %v193
    %v195 = vand.u32 %v142, 4294901760
    %196 = vmatpush.msra.mxu0 %v195
    %v197 = vand.u32 %v141, 4294901760
    %198 = vmatpush.msra.mxu0 %v197
    %v199 = vand.u32 %v140, 4294901760
    %200 = vmatpush.msra.mxu0 %v199
    %v201 = vand.u32 %v139, 4294901760
    %202 = vmatpush.msra.mxu0 %v201
    %v203 = vand.u32 %v138, 4294901760
    %204 = vmatpush.msra.mxu0 %v203
    %v205 = vand.u32 %v137, 4294901760
    %206 = vmatpush.msra.mxu0 %v205
    %v207 = vand.u32 %v129, 4294901760
    %v208 = vsub.f32 %v129, %v207
    %v209 = vand.u32 %v208, 4294901760
    %v210 = vsub.f32 %v208, %v209
    %v211 = vand.u32 %v210, 4294901760
    %212 = vmatmul.f32.gmra.mxu0 %v211
    %v213 = vpop.f32.mrf.mxu0
    %v214 = vadd.f32 %v162, %v213
    %v215 = vand.u32 %v131, 4294901760
    %v216 = vsub.f32 %v131, %v215
    %v217 = vand.u32 %v216, 4294901760
    %v218 = vsub.f32 %v216, %v217
    %v219 = vand.u32 %v218, 4294901760
    %220 = vmatmul.f32.gmra.mxu0 %v219
    %v221 = vpop.f32.mrf.mxu0
    %v222 = vadd.f32 %v162, %v221
    %v223 = vand.u32 %v133, 4294901760
    %v224 = vsub.f32 %v133, %v223
    %v225 = vand.u32 %v224, 4294901760
    %v226 = vsub.f32 %v224, %v225
    %v227 = vand.u32 %v226, 4294901760
    %228 = vmatmul.f32.gmra.mxu0 %v227
    %v229 = vpop.f32.mrf.mxu0
    %v230 = vadd.f32 %v162, %v229
    %v231 = vand.u32 %v135, 4294901760
    %v232 = vsub.f32 %v135, %v231
    %v233 = vand.u32 %v232, 4294901760
    %v234 = vsub.f32 %v232, %v233
    %v235 = vand.u32 %v234, 4294901760
    %236 = vmatmul.f32.gmra.mxu0 %v235
    %v237 = vpop.f32.mrf.mxu0
    %v238 = vadd.f32 %v162, %v237
    %239 = vdwg.mxu0
    %v240 = vand.u32 %v152, 4294901760
    %v241 = vsub.f32 %v152, %v240
    %v242 = vand.u32 %v241, 4294901760
    %v243 = vsub.f32 %v241, %v242
    %v244 = vand.u32 %v243, 4294901760
    %245 = vmatpush.msra.mxu0 %v244
    %v246 = vand.u32 %v151, 4294901760
    %v247 = vsub.f32 %v151, %v246
    %v248 = vand.u32 %v247, 4294901760
    %v249 = vsub.f32 %v247, %v248
    %v250 = vand.u32 %v249, 4294901760
    %251 = vmatpush.msra.mxu0 %v250
    %v252 = vand.u32 %v150, 4294901760
    %v253 = vsub.f32 %v150, %v252
    %v254 = vand.u32 %v253, 4294901760
    %v255 = vsub.f32 %v253, %v254
    %v256 = vand.u32 %v255, 4294901760
    %257 = vmatpush.msra.mxu0 %v256
    %v258 = vand.u32 %v149, 4294901760
    %v259 = vsub.f32 %v149, %v258
    %v260 = vand.u32 %v259, 4294901760
    %v261 = vsub.f32 %v259, %v260
    %v262 = vand.u32 %v261, 4294901760
    %263 = vmatpush.msra.mxu0 %v262
    %v264 = vand.u32 %v148, 4294901760
    %v265 = vsub.f32 %v148, %v264
    %v266 = vand.u32 %v265, 4294901760
    %v267 = vsub.f32 %v265, %v266
    %v268 = vand.u32 %v267, 4294901760
    %269 = vmatpush.msra.mxu0 %v268
    %v270 = vand.u32 %v147, 4294901760
    %v271 = vsub.f32 %v147, %v270
    %v272 = vand.u32 %v271, 4294901760
    %v273 = vsub.f32 %v271, %v272
    %v274 = vand.u32 %v273, 4294901760
    %275 = vmatpush.msra.mxu0 %v274
    %v276 = vand.u32 %v146, 4294901760
    %v277 = vsub.f32 %v146, %v276
    %v278 = vand.u32 %v277, 4294901760
    %v279 = vsub.f32 %v277, %v278
    %v280 = vand.u32 %v279, 4294901760
    %281 = vmatpush.msra.mxu0 %v280
    %v282 = vand.u32 %v145, 4294901760
    %v283 = vsub.f32 %v145, %v282
    %v284 = vand.u32 %v283, 4294901760
    %v285 = vsub.f32 %v283, %v284
    %v286 = vand.u32 %v285, 4294901760
    %287 = vmatpush.msra.mxu0 %v286
    %v288 = vand.u32 %v144, 4294901760
    %v289 = vsub.f32 %v144, %v288
    %v290 = vand.u32 %v289, 4294901760
    %v291 = vsub.f32 %v289, %v290
    %v292 = vand.u32 %v291, 4294901760
    %293 = vmatpush.msra.mxu0 %v292
    %v294 = vand.u32 %v143, 4294901760
    %v295 = vsub.f32 %v143, %v294
    %v296 = vand.u32 %v295, 4294901760
    %v297 = vsub.f32 %v295, %v296
    %v298 = vand.u32 %v297, 4294901760
    %299 = vmatpush.msra.mxu0 %v298
    %v300 = vand.u32 %v142, 4294901760
    %v301 = vsub.f32 %v142, %v300
    %v302 = vand.u32 %v301, 4294901760
    %v303 = vsub.f32 %v301, %v302
    %v304 = vand.u32 %v303, 4294901760
    %305 = vmatpush.msra.mxu0 %v304
    %v306 = vand.u32 %v141, 4294901760
    %v307 = vsub.f32 %v141, %v306
    %v308 = vand.u32 %v307, 4294901760
    %v309 = vsub.f32 %v307, %v308
    %v310 = vand.u32 %v309, 4294901760
    %311 = vmatpush.msra.mxu0 %v310
    %v312 = vand.u32 %v140, 4294901760
    %v313 = vsub.f32 %v140, %v312
    %v314 = vand.u32 %v313, 4294901760
    %v315 = vsub.f32 %v313, %v314
    %v316 = vand.u32 %v315, 4294901760
    %317 = vmatpush.msra.mxu0 %v316
    %v318 = vand.u32 %v139, 4294901760
    %v319 = vsub.f32 %v139, %v318
    %v320 = vand.u32 %v319, 4294901760
    %v321 = vsub.f32 %v319, %v320
    %v322 = vand.u32 %v321, 4294901760
    %323 = vmatpush.msra.mxu0 %v322
    %v324 = vand.u32 %v138, 4294901760
    %v325 = vsub.f32 %v138, %v324
    %v326 = vand.u32 %v325, 4294901760
    %v327 = vsub.f32 %v325, %v326
    %v328 = vand.u32 %v327, 4294901760
    %329 = vmatpush.msra.mxu0 %v328
    %v330 = vand.u32 %v137, 4294901760
    %v331 = vsub.f32 %v137, %v330
    %v332 = vand.u32 %v331, 4294901760
    %v333 = vsub.f32 %v331, %v332
    %v334 = vand.u32 %v333, 4294901760
    %335 = vmatpush.msra.mxu0 %v334
    %v336 = vand.u32 %v129, 4294901760
    %337 = vmatmul.f32.gmra.mxu0 %v336
    %v338 = vpop.f32.mrf.mxu0
    %v339 = vadd.f32 %v214, %v338
    %v340 = vand.u32 %v131, 4294901760
    %341 = vmatmul.f32.gmra.mxu0 %v340
    %v342 = vpop.f32.mrf.mxu0
    %v343 = vadd.f32 %v222, %v342
    %v344 = vand.u32 %v133, 4294901760
    %345 = vmatmul.f32.gmra.mxu0 %v344
    %v346 = vpop.f32.mrf.mxu0
    %v347 = vadd.f32 %v230, %v346
    %v348 = vand.u32 %v135, 4294901760
    %349 = vmatmul.f32.gmra.mxu0 %v348
    %v350 = vpop.f32.mrf.mxu0
    %v351 = vadd.f32 %v238, %v350
    %352 = vdwg.mxu0
    %v353 = vand.u32 %v152, 4294901760
    %v354 = vsub.f32 %v152, %v353
    %355 = vmatpush.msra.mxu0 %v354
    %v356 = vand.u32 %v151, 4294901760
    %v357 = vsub.f32 %v151, %v356
    %358 = vmatpush.msra.mxu0 %v357
    %v359 = vand.u32 %v150, 4294901760
    %v360 = vsub.f32 %v150, %v359
    %361 = vmatpush.msra.mxu0 %v360
    %v362 = vand.u32 %v149, 4294901760
    %v363 = vsub.f32 %v149, %v362
    %364 = vmatpush.msra.mxu0 %v363
    %v365 = vand.u32 %v148, 4294901760
    %v366 = vsub.f32 %v148, %v365
    %367 = vmatpush.msra.mxu0 %v366
    %v368 = vand.u32 %v147, 4294901760
    %v369 = vsub.f32 %v147, %v368
    %370 = vmatpush.msra.mxu0 %v369
    %v371 = vand.u32 %v146, 4294901760
    %v372 = vsub.f32 %v146, %v371
    %373 = vmatpush.msra.mxu0 %v372
    %v374 = vand.u32 %v145, 4294901760
    %v375 = vsub.f32 %v145, %v374
    %376 = vmatpush.msra.mxu0 %v375
    %v377 = vand.u32 %v144, 4294901760
    %v378 = vsub.f32 %v144, %v377
    %379 = vmatpush.msra.mxu0 %v378
    %v380 = vand.u32 %v143, 4294901760
    %v381 = vsub.f32 %v143, %v380
    %382 = vmatpush.msra.mxu0 %v381
    %v383 = vand.u32 %v142, 4294901760
    %v384 = vsub.f32 %v142, %v383
    %385 = vmatpush.msra.mxu0 %v384
    %v386 = vand.u32 %v141, 4294901760
    %v387 = vsub.f32 %v141, %v386
    %388 = vmatpush.msra.mxu0 %v387
    %v389 = vand.u32 %v140, 4294901760
    %v390 = vsub.f32 %v140, %v389
    %391 = vmatpush.msra.mxu0 %v390
    %v392 = vand.u32 %v139, 4294901760
    %v393 = vsub.f32 %v139, %v392
    %394 = vmatpush.msra.mxu0 %v393
    %v395 = vand.u32 %v138, 4294901760
    %v396 = vsub.f32 %v138, %v395
    %397 = vmatpush.msra.mxu0 %v396
    %v398 = vand.u32 %v137, 4294901760
    %v399 = vsub.f32 %v137, %v398
    %400 = vmatpush.msra.mxu0 %v399
    %v401 = vand.u32 %v129, 4294901760
    %v402 = vsub.f32 %v129, %v401
    %403 = vmatmul.f32.gmra.mxu0 %v402
    %v404 = vpop.f32.mrf.mxu0
    %v405 = vadd.f32 %v339, %v404
    %v406 = vand.u32 %v131, 4294901760
    %v407 = vsub.f32 %v131, %v406
    %408 = vmatmul.f32.gmra.mxu0 %v407
    %v409 = vpop.f32.mrf.mxu0
    %v410 = vadd.f32 %v343, %v409
    %v411 = vand.u32 %v133, 4294901760
    %v412 = vsub.f32 %v133, %v411
    %413 = vmatmul.f32.gmra.mxu0 %v412
    %v414 = vpop.f32.mrf.mxu0
    %v415 = vadd.f32 %v347, %v414
    %v416 = vand.u32 %v135, 4294901760
    %v417 = vsub.f32 %v135, %v416
    %418 = vmatmul.f32.gmra.mxu0 %v417
    %v419 = vpop.f32.mrf.mxu0
    %v420 = vadd.f32 %v351, %v419
    %421 = vdwg.mxu0
    %v422 = vand.u32 %v152, 4294901760
    %423 = vmatpush.msra.mxu0 %v422
    %v424 = vand.u32 %v151, 4294901760
    %425 = vmatpush.msra.mxu0 %v424
    %v426 = vand.u32 %v150, 4294901760
    %427 = vmatpush.msra.mxu0 %v426
    %v428 = vand.u32 %v149, 4294901760
    %429 = vmatpush.msra.mxu0 %v428
    %v430 = vand.u32 %v148, 4294901760
    %431 = vmatpush.msra.mxu0 %v430
    %v432 = vand.u32 %v147, 4294901760
    %433 = vmatpush.msra.mxu0 %v432
    %v434 = vand.u32 %v146, 4294901760
    %435 = vmatpush.msra.mxu0 %v434
    %v436 = vand.u32 %v145, 4294901760
    %437 = vmatpush.msra.mxu0 %v436
    %v438 = vand.u32 %v144, 4294901760
    %439 = vmatpush.msra.mxu0 %v438
    %v440 = vand.u32 %v143, 4294901760
    %441 = vmatpush.msra.mxu0 %v440
    %v442 = vand.u32 %v142, 4294901760
    %443 = vmatpush.msra.mxu0 %v442
    %v444 = vand.u32 %v141, 4294901760
    %445 = vmatpush.msra.mxu0 %v444
    %v446 = vand.u32 %v140, 4294901760
    %447 = vmatpush.msra.mxu0 %v446
    %v448 = vand.u32 %v139, 4294901760
    %449 = vmatpush.msra.mxu0 %v448
    %v450 = vand.u32 %v138, 4294901760
    %451 = vmatpush.msra.mxu0 %v450
    %v452 = vand.u32 %v137, 4294901760
    %453 = vmatpush.msra.mxu0 %v452
    %v454 = vand.u32 %v129, 4294901760
    %v455 = vsub.f32 %v129, %v454
    %v456 = vand.u32 %v455, 4294901760
    %457 = vmatmul.f32.gmra.mxu0 %v456
    %v458 = vpop.f32.mrf.mxu0
    %v459 = vadd.f32 %v405, %v458
    %v460 = vand.u32 %v131, 4294901760
    %v461 = vsub.f32 %v131, %v460
    %v462 = vand.u32 %v461, 4294901760
    %463 = vmatmul.f32.gmra.mxu0 %v462
    %v464 = vpop.f32.mrf.mxu0
    %v465 = vadd.f32 %v410, %v464
    %v466 = vand.u32 %v133, 4294901760
    %v467 = vsub.f32 %v133, %v466
    %v468 = vand.u32 %v467, 4294901760
    %469 = vmatmul.f32.gmra.mxu0 %v468
    %v470 = vpop.f32.mrf.mxu0
    %v471 = vadd.f32 %v415, %v470
    %v472 = vand.u32 %v135, 4294901760
    %v473 = vsub.f32 %v135, %v472
    %v474 = vand.u32 %v473, 4294901760
    %475 = vmatmul.f32.gmra.mxu0 %v474
    %v476 = vpop.f32.mrf.mxu0
    %v477 = vadd.f32 %v420, %v476
    %478 = vdwg.mxu0
    %v479 = vand.u32 %v152, 4294901760
    %v480 = vsub.f32 %v152, %v479
    %v481 = vand.u32 %v480, 4294901760
    %482 = vmatpush.msra.mxu0 %v481
    %v483 = vand.u32 %v151, 4294901760
    %v484 = vsub.f32 %v151, %v483
    %v485 = vand.u32 %v484, 4294901760
    %486 = vmatpush.msra.mxu0 %v485
    %v487 = vand.u32 %v150, 4294901760
    %v488 = vsub.f32 %v150, %v487
    %v489 = vand.u32 %v488, 4294901760
    %490 = vmatpush.msra.mxu0 %v489
    %v491 = vand.u32 %v149, 4294901760
    %v492 = vsub.f32 %v149, %v491
    %v493 = vand.u32 %v492, 4294901760
    %494 = vmatpush.msra.mxu0 %v493
    %v495 = vand.u32 %v148, 4294901760
    %v496 = vsub.f32 %v148, %v495
    %v497 = vand.u32 %v496, 4294901760
    %498 = vmatpush.msra.mxu0 %v497
    %v499 = vand.u32 %v147, 4294901760
    %v500 = vsub.f32 %v147, %v499
    %v501 = vand.u32 %v500, 4294901760
    %502 = vmatpush.msra.mxu0 %v501
    %v503 = vand.u32 %v146, 4294901760
    %v504 = vsub.f32 %v146, %v503
    %v505 = vand.u32 %v504, 4294901760
    %506 = vmatpush.msra.mxu0 %v505
    %v507 = vand.u32 %v145, 4294901760
    %v508 = vsub.f32 %v145, %v507
    %v509 = vand.u32 %v508, 4294901760
    %510 = vmatpush.msra.mxu0 %v509
    %v511 = vand.u32 %v144, 4294901760
    %v512 = vsub.f32 %v144, %v511
    %v513 = vand.u32 %v512, 4294901760
    %514 = vmatpush.msra.mxu0 %v513
    %v515 = vand.u32 %v143, 4294901760
    %v516 = vsub.f32 %v143, %v515
    %v517 = vand.u32 %v516, 4294901760
    %518 = vmatpush.msra.mxu0 %v517
    %v519 = vand.u32 %v142, 4294901760
    %v520 = vsub.f32 %v142, %v519
    %v521 = vand.u32 %v520, 4294901760
    %522 = vmatpush.msra.mxu0 %v521
    %v523 = vand.u32 %v141, 4294901760
    %v524 = vsub.f32 %v141, %v523
    %v525 = vand.u32 %v524, 4294901760
    %526 = vmatpush.msra.mxu0 %v525
    %v527 = vand.u32 %v140, 4294901760
    %v528 = vsub.f32 %v140, %v527
    %v529 = vand.u32 %v528, 4294901760
    %530 = vmatpush.msra.mxu0 %v529
    %v531 = vand.u32 %v139, 4294901760
    %v532 = vsub.f32 %v139, %v531
    %v533 = vand.u32 %v532, 4294901760
    %534 = vmatpush.msra.mxu0 %v533
    %v535 = vand.u32 %v138, 4294901760
    %v536 = vsub.f32 %v138, %v535
    %v537 = vand.u32 %v536, 4294901760
    %538 = vmatpush.msra.mxu0 %v537
    %v539 = vand.u32 %v137, 4294901760
    %v540 = vsub.f32 %v137, %v539
    %v541 = vand.u32 %v540, 4294901760
    %542 = vmatpush.msra.mxu0 %v541
    %v543 = vand.u32 %v129, 4294901760
    %544 = vmatmul.f32.gmra.mxu0 %v543
    %v545 = vpop.f32.mrf.mxu0
    %v546 = vadd.f32 %v459, %v545
    %v547 = vand.u32 %v131, 4294901760
    %548 = vmatmul.f32.gmra.mxu0 %v547
    %v549 = vpop.f32.mrf.mxu0
    %v550 = vadd.f32 %v465, %v549
    %v551 = vand.u32 %v133, 4294901760
    %552 = vmatmul.f32.gmra.mxu0 %v551
    %v553 = vpop.f32.mrf.mxu0
    %v554 = vadd.f32 %v471, %v553
    %v555 = vand.u32 %v135, 4294901760
    %556 = vmatmul.f32.gmra.mxu0 %v555
    %v557 = vpop.f32.mrf.mxu0
    %v558 = vadd.f32 %v477, %v557
    %559 = vdwg.mxu0
    %v560 = vand.u32 %v152, 4294901760
    %561 = vmatpush.msra.mxu0 %v560
    %v562 = vand.u32 %v151, 4294901760
    %563 = vmatpush.msra.mxu0 %v562
    %v564 = vand.u32 %v150, 4294901760
    %565 = vmatpush.msra.mxu0 %v564
    %v566 = vand.u32 %v149, 4294901760
    %567 = vmatpush.msra.mxu0 %v566
    %v568 = vand.u32 %v148, 4294901760
    %569 = vmatpush.msra.mxu0 %v568
    %v570 = vand.u32 %v147, 4294901760
    %571 = vmatpush.msra.mxu0 %v570
    %v572 = vand.u32 %v146, 4294901760
    %573 = vmatpush.msra.mxu0 %v572
    %v574 = vand.u32 %v145, 4294901760
    %575 = vmatpush.msra.mxu0 %v574
    %v576 = vand.u32 %v144, 4294901760
    %577 = vmatpush.msra.mxu0 %v576
    %v578 = vand.u32 %v143, 4294901760
    %579 = vmatpush.msra.mxu0 %v578
    %v580 = vand.u32 %v142, 4294901760
    %581 = vmatpush.msra.mxu0 %v580
    %v582 = vand.u32 %v141, 4294901760
    %583 = vmatpush.msra.mxu0 %v582
    %v584 = vand.u32 %v140, 4294901760
    %585 = vmatpush.msra.mxu0 %v584
    %v586 = vand.u32 %v139, 4294901760
    %587 = vmatpush.msra.mxu0 %v586
    %v588 = vand.u32 %v138, 4294901760
    %589 = vmatpush.msra.mxu0 %v588
    %v590 = vand.u32 %v137, 4294901760
    %591 = vmatpush.msra.mxu0 %v590
    %v592 = vand.u32 %v129, 4294901760
    %593 = vmatmul.f32.gmra.mxu0 %v592
    %v594 = vpop.f32.mrf.mxu0
    %v595 = vadd.f32 %v546, %v594
    %v596 = vand.u32 %v131, 4294901760
    %597 = vmatmul.f32.gmra.mxu0 %v596
    %v598 = vpop.f32.mrf.mxu0
    %v599 = vadd.f32 %v550, %v598
    %v600 = vand.u32 %v133, 4294901760
    %601 = vmatmul.f32.gmra.mxu0 %v600
    %v602 = vpop.f32.mrf.mxu0
    %v603 = vadd.f32 %v554, %v602
    %v604 = vand.u32 %v135, 4294901760
    %605 = vmatmul.f32.gmra.mxu0 %v604
    %v606 = vpop.f32.mrf.mxu0
    %v607 = vadd.f32 %v558, %v606
    %608 = vdwg.mxu0
    %609 = vmatpush.msra.mxu0 0.0
    %610 = vmatpush.msra.mxu0 0.0
    %611 = vmatpush.msra.mxu0 0.0
    %612 = vmatpush.msra.mxu0 0.0
    %613 = vmatpush.msra.mxu0 0.0
    %614 = vmatpush.msra.mxu0 0.0
    %615 = vmatpush.msra.mxu0 0.0
    %616 = vmatpush.msra.mxu0 0.0
    %v617 = vand.u32 %v160, 4294901760
    %618 = vmatpush.msra.mxu0 %v617
    %v619 = vand.u32 %v159, 4294901760
    %620 = vmatpush.msra.mxu0 %v619
    %v621 = vand.u32 %v158, 4294901760
    %622 = vmatpush.msra.mxu0 %v621
    %v623 = vand.u32 %v157, 4294901760
    %624 = vmatpush.msra.mxu0 %v623
    %v625 = vand.u32 %v156, 4294901760
    %626 = vmatpush.msra.mxu0 %v625
    %v627 = vand.u32 %v155, 4294901760
    %628 = vmatpush.msra.mxu0 %v627
    %v629 = vand.u32 %v154, 4294901760
    %630 = vmatpush.msra.mxu0 %v629
    %v631 = vand.u32 %v153, 4294901760
    %632 = vmatpush.msra.mxu0 %v631
    %v633 = vand.u32 %v164, 4294901760
    %v634 = vsub.f32 %v164, %v633
    %v635 = vand.u32 %v634, 4294901760
    %v636 = vsub.f32 %v634, %v635
    %v637 = vand.u32 %v636, 4294901760
    %638 = vmatmul.f32.gmra.mxu0 %v637
    %v639 = vpop.f32.mrf.mxu0
    %v640 = vadd.f32 %v595, %v639
    %v641 = vand.u32 %v167, 4294901760
    %v642 = vsub.f32 %v167, %v641
    %v643 = vand.u32 %v642, 4294901760
    %v644 = vsub.f32 %v642, %v643
    %v645 = vand.u32 %v644, 4294901760
    %646 = vmatmul.f32.gmra.mxu0 %v645
    %v647 = vpop.f32.mrf.mxu0
    %v648 = vadd.f32 %v599, %v647
    %v649 = vand.u32 %v170, 4294901760
    %v650 = vsub.f32 %v170, %v649
    %v651 = vand.u32 %v650, 4294901760
    %v652 = vsub.f32 %v650, %v651
    %v653 = vand.u32 %v652, 4294901760
    %654 = vmatmul.f32.gmra.mxu0 %v653
    %v655 = vpop.f32.mrf.mxu0
    %v656 = vadd.f32 %v603, %v655
    %v657 = vand.u32 %v173, 4294901760
    %v658 = vsub.f32 %v173, %v657
    %v659 = vand.u32 %v658, 4294901760
    %v660 = vsub.f32 %v658, %v659
    %v661 = vand.u32 %v660, 4294901760
    %662 = vmatmul.f32.gmra.mxu0 %v661
    %v663 = vpop.f32.mrf.mxu0
    %v664 = vadd.f32 %v607, %v663
    %665 = vdwg.mxu0
    %666 = vmatpush.msra.mxu0 0.0
    %667 = vmatpush.msra.mxu0 0.0
    %668 = vmatpush.msra.mxu0 0.0
    %669 = vmatpush.msra.mxu0 0.0
    %670 = vmatpush.msra.mxu0 0.0
    %671 = vmatpush.msra.mxu0 0.0
    %672 = vmatpush.msra.mxu0 0.0
    %673 = vmatpush.msra.mxu0 0.0
    %v674 = vand.u32 %v160, 4294901760
    %v675 = vsub.f32 %v160, %v674
    %v676 = vand.u32 %v675, 4294901760
    %v677 = vsub.f32 %v675, %v676
    %v678 = vand.u32 %v677, 4294901760
    %679 = vmatpush.msra.mxu0 %v678
    %v680 = vand.u32 %v159, 4294901760
    %v681 = vsub.f32 %v159, %v680
    %v682 = vand.u32 %v681, 4294901760
    %v683 = vsub.f32 %v681, %v682
    %v684 = vand.u32 %v683, 4294901760
    %685 = vmatpush.msra.mxu0 %v684
    %v686 = vand.u32 %v158, 4294901760
    %v687 = vsub.f32 %v158, %v686
    %v688 = vand.u32 %v687, 4294901760
    %v689 = vsub.f32 %v687, %v688
    %v690 = vand.u32 %v689, 4294901760
    %691 = vmatpush.msra.mxu0 %v690
    %v692 = vand.u32 %v157, 4294901760
    %v693 = vsub.f32 %v157, %v692
    %v694 = vand.u32 %v693, 4294901760
    %v695 = vsub.f32 %v693, %v694
    %v696 = vand.u32 %v695, 4294901760
    %697 = vmatpush.msra.mxu0 %v696
    %v698 = vand.u32 %v156, 4294901760
    %v699 = vsub.f32 %v156, %v698
    %v700 = vand.u32 %v699, 4294901760
    %v701 = vsub.f32 %v699, %v700
    %v702 = vand.u32 %v701, 4294901760
    %703 = vmatpush.msra.mxu0 %v702
    %v704 = vand.u32 %v155, 4294901760
    %v705 = vsub.f32 %v155, %v704
    %v706 = vand.u32 %v705, 4294901760
    %v707 = vsub.f32 %v705, %v706
    %v708 = vand.u32 %v707, 4294901760
    %709 = vmatpush.msra.mxu0 %v708
    %v710 = vand.u32 %v154, 4294901760
    %v711 = vsub.f32 %v154, %v710
    %v712 = vand.u32 %v711, 4294901760
    %v713 = vsub.f32 %v711, %v712
    %v714 = vand.u32 %v713, 4294901760
    %715 = vmatpush.msra.mxu0 %v714
    %v716 = vand.u32 %v153, 4294901760
    %v717 = vsub.f32 %v153, %v716
    %v718 = vand.u32 %v717, 4294901760
    %v719 = vsub.f32 %v717, %v718
    %v720 = vand.u32 %v719, 4294901760
    %721 = vmatpush.msra.mxu0 %v720
    %v722 = vand.u32 %v164, 4294901760
    %723 = vmatmul.f32.gmra.mxu0 %v722
    %v724 = vpop.f32.mrf.mxu0
    %v725 = vadd.f32 %v640, %v724
    %v726 = vand.u32 %v167, 4294901760
    %727 = vmatmul.f32.gmra.mxu0 %v726
    %v728 = vpop.f32.mrf.mxu0
    %v729 = vadd.f32 %v648, %v728
    %v730 = vand.u32 %v170, 4294901760
    %731 = vmatmul.f32.gmra.mxu0 %v730
    %v732 = vpop.f32.mrf.mxu0
    %v733 = vadd.f32 %v656, %v732
    %v734 = vand.u32 %v173, 4294901760
    %735 = vmatmul.f32.gmra.mxu0 %v734
    %v736 = vpop.f32.mrf.mxu0
    %v737 = vadd.f32 %v664, %v736
    %738 = vdwg.mxu0
    %739 = vmatpush.msra.mxu0 0.0
    %740 = vmatpush.msra.mxu0 0.0
    %741 = vmatpush.msra.mxu0 0.0
    %742 = vmatpush.msra.mxu0 0.0
    %743 = vmatpush.msra.mxu0 0.0
    %744 = vmatpush.msra.mxu0 0.0
    %745 = vmatpush.msra.mxu0 0.0
    %746 = vmatpush.msra.mxu0 0.0
    %v747 = vand.u32 %v160, 4294901760
    %v748 = vsub.f32 %v160, %v747
    %749 = vmatpush.msra.mxu0 %v748
    %v750 = vand.u32 %v159, 4294901760
    %v751 = vsub.f32 %v159, %v750
    %752 = vmatpush.msra.mxu0 %v751
    %v753 = vand.u32 %v158, 4294901760
    %v754 = vsub.f32 %v158, %v753
    %755 = vmatpush.msra.mxu0 %v754
    %v756 = vand.u32 %v157, 4294901760
    %v757 = vsub.f32 %v157, %v756
    %758 = vmatpush.msra.mxu0 %v757
    %v759 = vand.u32 %v156, 4294901760
    %v760 = vsub.f32 %v156, %v759
    %761 = vmatpush.msra.mxu0 %v760
    %v762 = vand.u32 %v155, 4294901760
    %v763 = vsub.f32 %v155, %v762
    %764 = vmatpush.msra.mxu0 %v763
    %v765 = vand.u32 %v154, 4294901760
    %v766 = vsub.f32 %v154, %v765
    %767 = vmatpush.msra.mxu0 %v766
    %v768 = vand.u32 %v153, 4294901760
    %v769 = vsub.f32 %v153, %v768
    %770 = vmatpush.msra.mxu0 %v769
    %v771 = vand.u32 %v164, 4294901760
    %v772 = vsub.f32 %v164, %v771
    %773 = vmatmul.f32.gmra.mxu0 %v772
    %v774 = vpop.f32.mrf.mxu0
    %v775 = vadd.f32 %v725, %v774
    %v776 = vand.u32 %v167, 4294901760
    %v777 = vsub.f32 %v167, %v776
    %778 = vmatmul.f32.gmra.mxu0 %v777
    %v779 = vpop.f32.mrf.mxu0
    %v780 = vadd.f32 %v729, %v779
    %v781 = vand.u32 %v170, 4294901760
    %v782 = vsub.f32 %v170, %v781
    %783 = vmatmul.f32.gmra.mxu0 %v782
    %v784 = vpop.f32.mrf.mxu0
    %v785 = vadd.f32 %v733, %v784
    %v786 = vand.u32 %v173, 4294901760
    %v787 = vsub.f32 %v173, %v786
    %788 = vmatmul.f32.gmra.mxu0 %v787
    %v789 = vpop.f32.mrf.mxu0
    %v790 = vadd.f32 %v737, %v789
    %791 = vdwg.mxu0
    %792 = vmatpush.msra.mxu0 0.0
    %793 = vmatpush.msra.mxu0 0.0
    %794 = vmatpush.msra.mxu0 0.0
    %795 = vmatpush.msra.mxu0 0.0
    %796 = vmatpush.msra.mxu0 0.0
    %797 = vmatpush.msra.mxu0 0.0
    %798 = vmatpush.msra.mxu0 0.0
    %799 = vmatpush.msra.mxu0 0.0
    %v800 = vand.u32 %v160, 4294901760
    %801 = vmatpush.msra.mxu0 %v800
    %v802 = vand.u32 %v159, 4294901760
    %803 = vmatpush.msra.mxu0 %v802
    %v804 = vand.u32 %v158, 4294901760
    %805 = vmatpush.msra.mxu0 %v804
    %v806 = vand.u32 %v157, 4294901760
    %807 = vmatpush.msra.mxu0 %v806
    %v808 = vand.u32 %v156, 4294901760
    %809 = vmatpush.msra.mxu0 %v808
    %v810 = vand.u32 %v155, 4294901760
    %811 = vmatpush.msra.mxu0 %v810
    %v812 = vand.u32 %v154, 4294901760
    %813 = vmatpush.msra.mxu0 %v812
    %v814 = vand.u32 %v153, 4294901760
    %815 = vmatpush.msra.mxu0 %v814
    %v816 = vand.u32 %v164, 4294901760
    %v817 = vsub.f32 %v164, %v816
    %v818 = vand.u32 %v817, 4294901760
    %819 = vmatmul.f32.gmra.mxu0 %v818
    %v820 = vpop.f32.mrf.mxu0
    %v821 = vadd.f32 %v775, %v820
    %v822 = vand.u32 %v167, 4294901760
    %v823 = vsub.f32 %v167, %v822
    %v824 = vand.u32 %v823, 4294901760
    %825 = vmatmul.f32.gmra.mxu0 %v824
    %v826 = vpop.f32.mrf.mxu0
    %v827 = vadd.f32 %v780, %v826
    %v828 = vand.u32 %v170, 4294901760
    %v829 = vsub.f32 %v170, %v828
    %v830 = vand.u32 %v829, 4294901760
    %831 = vmatmul.f32.gmra.mxu0 %v830
    %v832 = vpop.f32.mrf.mxu0
    %v833 = vadd.f32 %v785, %v832
    %v834 = vand.u32 %v173, 4294901760
    %v835 = vsub.f32 %v173, %v834
    %v836 = vand.u32 %v835, 4294901760
    %837 = vmatmul.f32.gmra.mxu0 %v836
    %v838 = vpop.f32.mrf.mxu0
    %v839 = vadd.f32 %v790, %v838
    %840 = vdwg.mxu0
    %841 = vmatpush.msra.mxu0 0.0
    %842 = vmatpush.msra.mxu0 0.0
    %843 = vmatpush.msra.mxu0 0.0
    %844 = vmatpush.msra.mxu0 0.0
    %845 = vmatpush.msra.mxu0 0.0
    %846 = vmatpush.msra.mxu0 0.0
    %847 = vmatpush.msra.mxu0 0.0
    %848 = vmatpush.msra.mxu0 0.0
    %v849 = vand.u32 %v160, 4294901760
    %v850 = vsub.f32 %v160, %v849
    %v851 = vand.u32 %v850, 4294901760
    %852 = vmatpush.msra.mxu0 %v851
    %v853 = vand.u32 %v159, 4294901760
    %v854 = vsub.f32 %v159, %v853
    %v855 = vand.u32 %v854, 4294901760
    %856 = vmatpush.msra.mxu0 %v855
    %v857 = vand.u32 %v158, 4294901760
    %v858 = vsub.f32 %v158, %v857
    %v859 = vand.u32 %v858, 4294901760
    %860 = vmatpush.msra.mxu0 %v859
    %v861 = vand.u32 %v157, 4294901760
    %v862 = vsub.f32 %v157, %v861
    %v863 = vand.u32 %v862, 4294901760
    %864 = vmatpush.msra.mxu0 %v863
    %v865 = vand.u32 %v156, 4294901760
    %v866 = vsub.f32 %v156, %v865
    %v867 = vand.u32 %v866, 4294901760
    %868 = vmatpush.msra.mxu0 %v867
    %v869 = vand.u32 %v155, 4294901760
    %v870 = vsub.f32 %v155, %v869
    %v871 = vand.u32 %v870, 4294901760
    %872 = vmatpush.msra.mxu0 %v871
    %v873 = vand.u32 %v154, 4294901760
    %v874 = vsub.f32 %v154, %v873
    %v875 = vand.u32 %v874, 4294901760
    %876 = vmatpush.msra.mxu0 %v875
    %v877 = vand.u32 %v153, 4294901760
    %v878 = vsub.f32 %v153, %v877
    %v879 = vand.u32 %v878, 4294901760
    %880 = vmatpush.msra.mxu0 %v879
    %v881 = vand.u32 %v164, 4294901760
    %882 = vmatmul.f32.gmra.mxu0 %v881
    %v883 = vpop.f32.mrf.mxu0
    %v884 = vadd.f32 %v821, %v883
    %v885 = vand.u32 %v167, 4294901760
    %886 = vmatmul.f32.gmra.mxu0 %v885
    %v887 = vpop.f32.mrf.mxu0
    %v888 = vadd.f32 %v827, %v887
    %v889 = vand.u32 %v170, 4294901760
    %890 = vmatmul.f32.gmra.mxu0 %v889
    %v891 = vpop.f32.mrf.mxu0
    %v892 = vadd.f32 %v833, %v891
    %v893 = vand.u32 %v173, 4294901760
    %894 = vmatmul.f32.gmra.mxu0 %v893
    %v895 = vpop.f32.mrf.mxu0
    %v896 = vadd.f32 %v839, %v895
    %897 = vdwg.mxu0
    %898 = vmatpush.msra.mxu0 0.0
    %899 = vmatpush.msra.mxu0 0.0
    %900 = vmatpush.msra.mxu0 0.0
    %901 = vmatpush.msra.mxu0 0.0
    %902 = vmatpush.msra.mxu0 0.0
    %903 = vmatpush.msra.mxu0 0.0
    %904 = vmatpush.msra.mxu0 0.0
    %905 = vmatpush.msra.mxu0 0.0
    %v906 = vand.u32 %v160, 4294901760
    %907 = vmatpush.msra.mxu0 %v906
    %v908 = vand.u32 %v159, 4294901760
    %909 = vmatpush.msra.mxu0 %v908
    %v910 = vand.u32 %v158, 4294901760
    %911 = vmatpush.msra.mxu0 %v910
    %v912 = vand.u32 %v157, 4294901760
    %913 = vmatpush.msra.mxu0 %v912
    %v914 = vand.u32 %v156, 4294901760
    %915 = vmatpush.msra.mxu0 %v914
    %v916 = vand.u32 %v155, 4294901760
    %917 = vmatpush.msra.mxu0 %v916
    %v918 = vand.u32 %v154, 4294901760
    %919 = vmatpush.msra.mxu0 %v918
    %v920 = vand.u32 %v153, 4294901760
    %921 = vmatpush.msra.mxu0 %v920
    %v922 = vand.u32 %v164, 4294901760
    %923 = vmatmul.f32.gmra.mxu0 %v922
    %v924 = vpop.f32.mrf.mxu0
    %v925 = vadd.f32 %v884, %v924
    %v926 = vand.u32 %v167, 4294901760
    %927 = vmatmul.f32.gmra.mxu0 %v926
    %v928 = vpop.f32.mrf.mxu0
    %v929 = vadd.f32 %v888, %v928
    %v930 = vand.u32 %v170, 4294901760
    %931 = vmatmul.f32.gmra.mxu0 %v930
    %v932 = vpop.f32.mrf.mxu0
    %v933 = vadd.f32 %v892, %v932
    %v934 = vand.u32 %v173, 4294901760
    %935 = vmatmul.f32.gmra.mxu0 %v934
    %v936 = vpop.f32.mrf.mxu0
    %v937 = vadd.f32 %v896, %v936
    %938 = vdwg.mxu0
    %v939 = vmax.f32 %v925, 0.0
    %v940 = vmax.f32 %v929, 0.0
    %v941 = vmax.f32 %v933, 0.0
    %v942 = vmax.f32 %v937, 0.0
    %947 = vrot.lane.b32.xlu0 %v939, 64
    %v948 = vpop.permute.xlu0 %947
    %949 = vrot.lane.b32.xlu0 %v940, 64
    %v950 = vpop.permute.xlu0 %949
    %951 = vrot.lane.b32.xlu0 %v941, 64
    %v952 = vpop.permute.xlu0 %951
    %953 = vrot.lane.b32.xlu0 %v942, 64
    %v954 = vpop.permute.xlu0 %953
    %v959 = vmax.f32 %v939, %v948
    %v960 = vmax.f32 %v940, %v950
    %v961 = vmax.f32 %v941, %v952
    %v962 = vmax.f32 %v942, %v954
    %963 = vst.msk [vmem:[#allocation3] sm:$0xff] %vm103, %v959
    %964 = vst.msk [vmem:[#allocation3 + $0x8] sm:$0xff] %vm103, %v960
    %965 = vst.msk [vmem:[#allocation3 + $0x10] sm:$0xff] %vm103, %v961
    %966 = vst.msk [vmem:[#allocation3 + $0x18] sm:$0xff] %vm103, %v962
    %v967 = vld [vmem:[#allocation3] ss:$2 sm:$0xff]
    %s968 = scalar_lea.vmem [#allocation3], 16
    %v969 = vld [vmem:[%s968] ss:$2 sm:$0xff]
    %s970 = scalar_lea.vmem [#allocation3], 1
    %v971 = vld [vmem:[%s970] ss:$2 sm:$0xff]
    %s972 = scalar_lea.vmem [#allocation3], 17
    %v973 = vld [vmem:[%s972] ss:$2 sm:$0xff]
    %v974 = vmax.f32 %v967, %v971
    %v975 = vmax.f32 %v969, %v973
    %v976 = vand.u32 %v49, 7
    %v977 = vand.u32 %v50, 7
    %vm978 = vcmp.eq.s32.totalorder %v976, 0
    %vm979 = vcmp.eq.s32.totalorder %v977, 0
    %v982 = vrot.slane %v974, 7
    %v983 = vrot.slane %v975, 7
    %v984 = vsel %vm65, %v982, %v983
    %v987 = vsel %vm65, 0.0, %v982
    %v988 = vsel %vm978, 0.0, %v987
    %v989 = vsel %vm979, 0.0, %v984
    %vm990 = vcmp.eq.s32.totalorder %v976, 7
    %vm991 = vcmp.eq.s32.totalorder %v977, 7
    %v992 = vrot.slane %v974, 1
    %v993 = vrot.slane %v975, 1
    %v994 = vsel %vm86, %v992, %v993
    %v997 = vsel %vm86, %v993, 0.0
    %v998 = vsel %vm990, 0.0, %v994
    %v999 = vsel %vm991, 0.0, %v997
    %1000 = vst.msk [vmem:[#allocation4] sm:$0xff] %vm103, %v988
    %1001 = vst.msk [vmem:[#allocation4 + $0x10] sm:$0xff] %vm103, %v989
    %1002 = vrot.lane.b32.xlu0 %v974, 64
    %v1003 = vpop.permute.xlu0 %1002
    %1004 = vrot.lane.b32.xlu0 %v975, 64
    %v1005 = vpop.permute.xlu0 %1004
    %1008 = vst.msk [vmem:[#allocation4] sm:$0xff] %vm120, %v1003
    %1009 = vst.msk [vmem:[#allocation4 + $0x10] sm:$0xff] %vm120, %v1005
    %1010 = vst.msk [vmem:[#allocation4 + $0x8] sm:$0xff] %vm103, %v998
    %1011 = vst.msk [vmem:[#allocation4 + $0x18] sm:$0xff] %vm103, %v999
    %v1012 = vld [vmem:[#allocation4] sm:$0xff]
    %v1013 = vld [vmem:[#allocation4 + $0x8] sm:$0xff]
    %v1014 = vld [vmem:[#allocation4 + $0x10] sm:$0xff]
    %v1015 = vld [vmem:[#allocation4 + $0x18] sm:$0xff]
    %v1016 = vld [vmem:[#allocation10 + $0xc0] sm:$0xff]
    %v1017 = vld [vmem:[#allocation10 + $0xc8] sm:$0xff]
    %v1018 = vld [vmem:[#allocation10 + $0xd0] sm:$0xff]
    %v1019 = vld [vmem:[#allocation10 + $0xd8] sm:$0xff]
    %v1020 = vld [vmem:[#allocation10 + $0xe0] sm:$0xff]
    %v1021 = vld [vmem:[#allocation10 + $0xe8] sm:$0xff]
    %v1022 = vld [vmem:[#allocation10 + $0xf0] sm:$0xff]
    %v1023 = vld [vmem:[#allocation10 + $0xf8] sm:$0xff]
    %v1024 = vld [vmem:[#allocation10 + $0x100] sm:$0xff]
    %v1025 = vld [vmem:[#allocation10 + $0x108] sm:$0xff]
    %v1026 = vld [vmem:[#allocation10 + $0x110] sm:$0xff]
    %v1027 = vld [vmem:[#allocation10 + $0x118] sm:$0xff]
    %v1028 = vld [vmem:[#allocation10 + $0x120] sm:$0xff]
    %v1029 = vld [vmem:[#allocation10 + $0x128] sm:$0xff]
    %v1030 = vld [vmem:[#allocation10 + $0x130] sm:$0xff]
    %v1031 = vld [vmem:[#allocation10 + $0x138] sm:$0xff]
    %v1032 = vld [vmem:[#allocation10 + $0x140] sm:$0xff]
    %v1033 = vld [vmem:[#allocation10 + $0x148] sm:$0xff]
    %v1034 = vld [vmem:[#allocation10 + $0x150] sm:$0xff]
    %v1035 = vld [vmem:[#allocation10 + $0x158] sm:$0xff]
    %v1036 = vld [vmem:[#allocation10 + $0x160] sm:$0xff]
    %v1037 = vld [vmem:[#allocation10 + $0x168] sm:$0xff]
    %v1038 = vld [vmem:[#allocation10 + $0x170] sm:$0xff]
    %v1039 = vld [vmem:[#allocation10 + $0x178] sm:$0xff]
    %v1040 = vld [vmem:[#allocation10 + $0x308] sm:$0x1]
    %v1041 = vperm.slane %v1040, 0
    %v1043 = vsel %vm103, %v1013, 0
    %v1046 = vsel %vm103, %v1015, 0
    %v1048 = vand.u32 %v1031, 4294901760
    %1049 = vmatpush.msra.mxu0 %v1048
    %v1050 = vand.u32 %v1030, 4294901760
    %1051 = vmatpush.msra.mxu0 %v1050
    %v1052 = vand.u32 %v1029, 4294901760
    %1053 = vmatpush.msra.mxu0 %v1052
    %v1054 = vand.u32 %v1028, 4294901760
    %1055 = vmatpush.msra.mxu0 %v1054
    %v1056 = vand.u32 %v1027, 4294901760
    %1057 = vmatpush.msra.mxu0 %v1056
    %v1058 = vand.u32 %v1026, 4294901760
    %1059 = vmatpush.msra.mxu0 %v1058
    %v1060 = vand.u32 %v1025, 4294901760
    %1061 = vmatpush.msra.mxu0 %v1060
    %v1062 = vand.u32 %v1024, 4294901760
    %1063 = vmatpush.msra.mxu0 %v1062
    %v1064 = vand.u32 %v1023, 4294901760
    %1065 = vmatpush.msra.mxu0 %v1064
    %v1066 = vand.u32 %v1022, 4294901760
    %1067 = vmatpush.msra.mxu0 %v1066
    %v1068 = vand.u32 %v1021, 4294901760
    %1069 = vmatpush.msra.mxu0 %v1068
    %v1070 = vand.u32 %v1020, 4294901760
    %1071 = vmatpush.msra.mxu0 %v1070
    %v1072 = vand.u32 %v1019, 4294901760
    %1073 = vmatpush.msra.mxu0 %v1072
    %v1074 = vand.u32 %v1018, 4294901760
    %1075 = vmatpush.msra.mxu0 %v1074
    %v1076 = vand.u32 %v1017, 4294901760
    %1077 = vmatpush.msra.mxu0 %v1076
    %v1078 = vand.u32 %v1016, 4294901760
    %1079 = vmatpush.msra.mxu0 %v1078
    %v1080 = vand.u32 %v1012, 4294901760
    %v1081 = vsub.f32 %v1012, %v1080
    %v1082 = vand.u32 %v1081, 4294901760
    %v1083 = vsub.f32 %v1081, %v1082
    %v1084 = vand.u32 %v1083, 4294901760
    %1085 = vmatmul.f32.gmra.mxu0 %v1084
    %v1086 = vpop.f32.mrf.mxu0
    %v1087 = vadd.f32 %v1041, %v1086
    %v1088 = vand.u32 %v1014, 4294901760
    %v1089 = vsub.f32 %v1014, %v1088
    %v1090 = vand.u32 %v1089, 4294901760
    %v1091 = vsub.f32 %v1089, %v1090
    %v1092 = vand.u32 %v1091, 4294901760
    %1093 = vmatmul.f32.gmra.mxu0 %v1092
    %v1094 = vpop.f32.mrf.mxu0
    %v1095 = vadd.f32 %v1041, %v1094
    %1096 = vdwg.mxu0
    %v1097 = vand.u32 %v1031, 4294901760
    %v1098 = vsub.f32 %v1031, %v1097
    %v1099 = vand.u32 %v1098, 4294901760
    %v1100 = vsub.f32 %v1098, %v1099
    %v1101 = vand.u32 %v1100, 4294901760
    %1102 = vmatpush.msra.mxu0 %v1101
    %v1103 = vand.u32 %v1030, 4294901760
    %v1104 = vsub.f32 %v1030, %v1103
    %v1105 = vand.u32 %v1104, 4294901760
    %v1106 = vsub.f32 %v1104, %v1105
    %v1107 = vand.u32 %v1106, 4294901760
    %1108 = vmatpush.msra.mxu0 %v1107
    %v1109 = vand.u32 %v1029, 4294901760
    %v1110 = vsub.f32 %v1029, %v1109
    %v1111 = vand.u32 %v1110, 4294901760
    %v1112 = vsub.f32 %v1110, %v1111
    %v1113 = vand.u32 %v1112, 4294901760
    %1114 = vmatpush.msra.mxu0 %v1113
    %v1115 = vand.u32 %v1028, 4294901760
    %v1116 = vsub.f32 %v1028, %v1115
    %v1117 = vand.u32 %v1116, 4294901760
    %v1118 = vsub.f32 %v1116, %v1117
    %v1119 = vand.u32 %v1118, 4294901760
    %1120 = vmatpush.msra.mxu0 %v1119
    %v1121 = vand.u32 %v1027, 4294901760
    %v1122 = vsub.f32 %v1027, %v1121
    %v1123 = vand.u32 %v1122, 4294901760
    %v1124 = vsub.f32 %v1122, %v1123
    %v1125 = vand.u32 %v1124, 4294901760
    %1126 = vmatpush.msra.mxu0 %v1125
    %v1127 = vand.u32 %v1026, 4294901760
    %v1128 = vsub.f32 %v1026, %v1127
    %v1129 = vand.u32 %v1128, 4294901760
    %v1130 = vsub.f32 %v1128, %v1129
    %v1131 = vand.u32 %v1130, 4294901760
    %1132 = vmatpush.msra.mxu0 %v1131
    %v1133 = vand.u32 %v1025, 4294901760
    %v1134 = vsub.f32 %v1025, %v1133
    %v1135 = vand.u32 %v1134, 4294901760
    %v1136 = vsub.f32 %v1134, %v1135
    %v1137 = vand.u32 %v1136, 4294901760
    %1138 = vmatpush.msra.mxu0 %v1137
    %v1139 = vand.u32 %v1024, 4294901760
    %v1140 = vsub.f32 %v1024, %v1139
    %v1141 = vand.u32 %v1140, 4294901760
    %v1142 = vsub.f32 %v1140, %v1141
    %v1143 = vand.u32 %v1142, 4294901760
    %1144 = vmatpush.msra.mxu0 %v1143
    %v1145 = vand.u32 %v1023, 4294901760
    %v1146 = vsub.f32 %v1023, %v1145
    %v1147 = vand.u32 %v1146, 4294901760
    %v1148 = vsub.f32 %v1146, %v1147
    %v1149 = vand.u32 %v1148, 4294901760
    %1150 = vmatpush.msra.mxu0 %v1149
    %v1151 = vand.u32 %v1022, 4294901760
    %v1152 = vsub.f32 %v1022, %v1151
    %v1153 = vand.u32 %v1152, 4294901760
    %v1154 = vsub.f32 %v1152, %v1153
    %v1155 = vand.u32 %v1154, 4294901760
    %1156 = vmatpush.msra.mxu0 %v1155
    %v1157 = vand.u32 %v1021, 4294901760
    %v1158 = vsub.f32 %v1021, %v1157
    %v1159 = vand.u32 %v1158, 4294901760
    %v1160 = vsub.f32 %v1158, %v1159
    %v1161 = vand.u32 %v1160, 4294901760
    %1162 = vmatpush.msra.mxu0 %v1161
    %v1163 = vand.u32 %v1020, 4294901760
    %v1164 = vsub.f32 %v1020, %v1163
    %v1165 = vand.u32 %v1164, 4294901760
    %v1166 = vsub.f32 %v1164, %v1165
    %v1167 = vand.u32 %v1166, 4294901760
    %1168 = vmatpush.msra.mxu0 %v1167
    %v1169 = vand.u32 %v1019, 4294901760
    %v1170 = vsub.f32 %v1019, %v1169
    %v1171 = vand.u32 %v1170, 4294901760
    %v1172 = vsub.f32 %v1170, %v1171
    %v1173 = vand.u32 %v1172, 4294901760
    %1174 = vmatpush.msra.mxu0 %v1173
    %v1175 = vand.u32 %v1018, 4294901760
    %v1176 = vsub.f32 %v1018, %v1175
    %v1177 = vand.u32 %v1176, 4294901760
    %v1178 = vsub.f32 %v1176, %v1177
    %v1179 = vand.u32 %v1178, 4294901760
    %1180 = vmatpush.msra.mxu0 %v1179
    %v1181 = vand.u32 %v1017, 4294901760
    %v1182 = vsub.f32 %v1017, %v1181
    %v1183 = vand.u32 %v1182, 4294901760
    %v1184 = vsub.f32 %v1182, %v1183
    %v1185 = vand.u32 %v1184, 4294901760
    %1186 = vmatpush.msra.mxu0 %v1185
    %v1187 = vand.u32 %v1016, 4294901760
    %v1188 = vsub.f32 %v1016, %v1187
    %v1189 = vand.u32 %v1188, 4294901760
    %v1190 = vsub.f32 %v1188, %v1189
    %v1191 = vand.u32 %v1190, 4294901760
    %1192 = vmatpush.msra.mxu0 %v1191
    %v1193 = vand.u32 %v1012, 4294901760
    %1194 = vmatmul.f32.gmra.mxu0 %v1193
    %v1195 = vpop.f32.mrf.mxu0
    %v1196 = vadd.f32 %v1087, %v1195
    %v1197 = vand.u32 %v1014, 4294901760
    %1198 = vmatmul.f32.gmra.mxu0 %v1197
    %v1199 = vpop.f32.mrf.mxu0
    %v1200 = vadd.f32 %v1095, %v1199
    %1201 = vdwg.mxu0
    %v1202 = vand.u32 %v1031, 4294901760
    %v1203 = vsub.f32 %v1031, %v1202
    %1204 = vmatpush.msra.mxu0 %v1203
    %v1205 = vand.u32 %v1030, 4294901760
    %v1206 = vsub.f32 %v1030, %v1205
    %1207 = vmatpush.msra.mxu0 %v1206
    %v1208 = vand.u32 %v1029, 4294901760
    %v1209 = vsub.f32 %v1029, %v1208
    %1210 = vmatpush.msra.mxu0 %v1209
    %v1211 = vand.u32 %v1028, 4294901760
    %v1212 = vsub.f32 %v1028, %v1211
    %1213 = vmatpush.msra.mxu0 %v1212
    %v1214 = vand.u32 %v1027, 4294901760
    %v1215 = vsub.f32 %v1027, %v1214
    %1216 = vmatpush.msra.mxu0 %v1215
    %v1217 = vand.u32 %v1026, 4294901760
    %v1218 = vsub.f32 %v1026, %v1217
    %1219 = vmatpush.msra.mxu0 %v1218
    %v1220 = vand.u32 %v1025, 4294901760
    %v1221 = vsub.f32 %v1025, %v1220
    %1222 = vmatpush.msra.mxu0 %v1221
    %v1223 = vand.u32 %v1024, 4294901760
    %v1224 = vsub.f32 %v1024, %v1223
    %1225 = vmatpush.msra.mxu0 %v1224
    %v1226 = vand.u32 %v1023, 4294901760
    %v1227 = vsub.f32 %v1023, %v1226
    %1228 = vmatpush.msra.mxu0 %v1227
    %v1229 = vand.u32 %v1022, 4294901760
    %v1230 = vsub.f32 %v1022, %v1229
    %1231 = vmatpush.msra.mxu0 %v1230
    %v1232 = vand.u32 %v1021, 4294901760
    %v1233 = vsub.f32 %v1021, %v1232
    %1234 = vmatpush.msra.mxu0 %v1233
    %v1235 = vand.u32 %v1020, 4294901760
    %v1236 = vsub.f32 %v1020, %v1235
    %1237 = vmatpush.msra.mxu0 %v1236
    %v1238 = vand.u32 %v1019, 4294901760
    %v1239 = vsub.f32 %v1019, %v1238
    %1240 = vmatpush.msra.mxu0 %v1239
    %v1241 = vand.u32 %v1018, 4294901760
    %v1242 = vsub.f32 %v1018, %v1241
    %1243 = vmatpush.msra.mxu0 %v1242
    %v1244 = vand.u32 %v1017, 4294901760
    %v1245 = vsub.f32 %v1017, %v1244
    %1246 = vmatpush.msra.mxu0 %v1245
    %v1247 = vand.u32 %v1016, 4294901760
    %v1248 = vsub.f32 %v1016, %v1247
    %1249 = vmatpush.msra.mxu0 %v1248
    %v1250 = vand.u32 %v1012, 4294901760
    %v1251 = vsub.f32 %v1012, %v1250
    %1252 = vmatmul.f32.gmra.mxu0 %v1251
    %v1253 = vpop.f32.mrf.mxu0
    %v1254 = vadd.f32 %v1196, %v1253
    %v1255 = vand.u32 %v1014, 4294901760
    %v1256 = vsub.f32 %v1014, %v1255
    %1257 = vmatmul.f32.gmra.mxu0 %v1256
    %v1258 = vpop.f32.mrf.mxu0
    %v1259 = vadd.f32 %v1200, %v1258
    %1260 = vdwg.mxu0
    %v1261 = vand.u32 %v1031, 4294901760
    %1262 = vmatpush.msra.mxu0 %v1261
    %v1263 = vand.u32 %v1030, 4294901760
    %1264 = vmatpush.msra.mxu0 %v1263
    %v1265 = vand.u32 %v1029, 4294901760
    %1266 = vmatpush.msra.mxu0 %v1265
    %v1267 = vand.u32 %v1028, 4294901760
    %1268 = vmatpush.msra.mxu0 %v1267
    %v1269 = vand.u32 %v1027, 4294901760
    %1270 = vmatpush.msra.mxu0 %v1269
    %v1271 = vand.u32 %v1026, 4294901760
    %1272 = vmatpush.msra.mxu0 %v1271
    %v1273 = vand.u32 %v1025, 4294901760
    %1274 = vmatpush.msra.mxu0 %v1273
    %v1275 = vand.u32 %v1024, 4294901760
    %1276 = vmatpush.msra.mxu0 %v1275
    %v1277 = vand.u32 %v1023, 4294901760
    %1278 = vmatpush.msra.mxu0 %v1277
    %v1279 = vand.u32 %v1022, 4294901760
    %1280 = vmatpush.msra.mxu0 %v1279
    %v1281 = vand.u32 %v1021, 4294901760
    %1282 = vmatpush.msra.mxu0 %v1281
    %v1283 = vand.u32 %v1020, 4294901760
    %1284 = vmatpush.msra.mxu0 %v1283
    %v1285 = vand.u32 %v1019, 4294901760
    %1286 = vmatpush.msra.mxu0 %v1285
    %v1287 = vand.u32 %v1018, 4294901760
    %1288 = vmatpush.msra.mxu0 %v1287
    %v1289 = vand.u32 %v1017, 4294901760
    %1290 = vmatpush.msra.mxu0 %v1289
    %v1291 = vand.u32 %v1016, 4294901760
    %1292 = vmatpush.msra.mxu0 %v1291
    %v1293 = vand.u32 %v1012, 4294901760
    %v1294 = vsub.f32 %v1012, %v1293
    %v1295 = vand.u32 %v1294, 4294901760
    %1296 = vmatmul.f32.gmra.mxu0 %v1295
    %v1297 = vpop.f32.mrf.mxu0
    %v1298 = vadd.f32 %v1254, %v1297
    %v1299 = vand.u32 %v1014, 4294901760
    %v1300 = vsub.f32 %v1014, %v1299
    %v1301 = vand.u32 %v1300, 4294901760
    %1302 = vmatmul.f32.gmra.mxu0 %v1301
    %v1303 = vpop.f32.mrf.mxu0
    %v1304 = vadd.f32 %v1259, %v1303
    %1305 = vdwg.mxu0
    %v1306 = vand.u32 %v1031, 4294901760
    %v1307 = vsub.f32 %v1031, %v1306
    %v1308 = vand.u32 %v1307, 4294901760
    %1309 = vmatpush.msra.mxu0 %v1308
    %v1310 = vand.u32 %v1030, 4294901760
    %v1311 = vsub.f32 %v1030, %v1310
    %v1312 = vand.u32 %v1311, 4294901760
    %1313 = vmatpush.msra.mxu0 %v1312
    %v1314 = vand.u32 %v1029, 4294901760
    %v1315 = vsub.f32 %v1029, %v1314
    %v1316 = vand.u32 %v1315, 4294901760
    %1317 = vmatpush.msra.mxu0 %v1316
    %v1318 = vand.u32 %v1028, 4294901760
    %v1319 = vsub.f32 %v1028, %v1318
    %v1320 = vand.u32 %v1319, 4294901760
    %1321 = vmatpush.msra.mxu0 %v1320
    %v1322 = vand.u32 %v1027, 4294901760
    %v1323 = vsub.f32 %v1027, %v1322
    %v1324 = vand.u32 %v1323, 4294901760
    %1325 = vmatpush.msra.mxu0 %v1324
    %v1326 = vand.u32 %v1026, 4294901760
    %v1327 = vsub.f32 %v1026, %v1326
    %v1328 = vand.u32 %v1327, 4294901760
    %1329 = vmatpush.msra.mxu0 %v1328
    %v1330 = vand.u32 %v1025, 4294901760
    %v1331 = vsub.f32 %v1025, %v1330
    %v1332 = vand.u32 %v1331, 4294901760
    %1333 = vmatpush.msra.mxu0 %v1332
    %v1334 = vand.u32 %v1024, 4294901760
    %v1335 = vsub.f32 %v1024, %v1334
    %v1336 = vand.u32 %v1335, 4294901760
    %1337 = vmatpush.msra.mxu0 %v1336
    %v1338 = vand.u32 %v1023, 4294901760
    %v1339 = vsub.f32 %v1023, %v1338
    %v1340 = vand.u32 %v1339, 4294901760
    %1341 = vmatpush.msra.mxu0 %v1340
    %v1342 = vand.u32 %v1022, 4294901760
    %v1343 = vsub.f32 %v1022, %v1342
    %v1344 = vand.u32 %v1343, 4294901760
    %1345 = vmatpush.msra.mxu0 %v1344
    %v1346 = vand.u32 %v1021, 4294901760
    %v1347 = vsub.f32 %v1021, %v1346
    %v1348 = vand.u32 %v1347, 4294901760
    %1349 = vmatpush.msra.mxu0 %v1348
    %v1350 = vand.u32 %v1020, 4294901760
    %v1351 = vsub.f32 %v1020, %v1350
    %v1352 = vand.u32 %v1351, 4294901760
    %1353 = vmatpush.msra.mxu0 %v1352
    %v1354 = vand.u32 %v1019, 4294901760
    %v1355 = vsub.f32 %v1019, %v1354
    %v1356 = vand.u32 %v1355, 4294901760
    %1357 = vmatpush.msra.mxu0 %v1356
    %v1358 = vand.u32 %v1018, 4294901760
    %v1359 = vsub.f32 %v1018, %v1358
    %v1360 = vand.u32 %v1359, 4294901760
    %1361 = vmatpush.msra.mxu0 %v1360
    %v1362 = vand.u32 %v1017, 4294901760
    %v1363 = vsub.f32 %v1017, %v1362
    %v1364 = vand.u32 %v1363, 4294901760
    %1365 = vmatpush.msra.mxu0 %v1364
    %v1366 = vand.u32 %v1016, 4294901760
    %v1367 = vsub.f32 %v1016, %v1366
    %v1368 = vand.u32 %v1367, 4294901760
    %1369 = vmatpush.msra.mxu0 %v1368
    %v1370 = vand.u32 %v1012, 4294901760
    %1371 = vmatmul.f32.gmra.mxu0 %v1370
    %v1372 = vpop.f32.mrf.mxu0
    %v1373 = vadd.f32 %v1298, %v1372
    %v1374 = vand.u32 %v1014, 4294901760
    %1375 = vmatmul.f32.gmra.mxu0 %v1374
    %v1376 = vpop.f32.mrf.mxu0
    %v1377 = vadd.f32 %v1304, %v1376
    %1378 = vdwg.mxu0
    %v1379 = vand.u32 %v1031, 4294901760
    %1380 = vmatpush.msra.mxu0 %v1379
    %v1381 = vand.u32 %v1030, 4294901760
    %1382 = vmatpush.msra.mxu0 %v1381
    %v1383 = vand.u32 %v1029, 4294901760
    %1384 = vmatpush.msra.mxu0 %v1383
    %v1385 = vand.u32 %v1028, 4294901760
    %1386 = vmatpush.msra.mxu0 %v1385
    %v1387 = vand.u32 %v1027, 4294901760
    %1388 = vmatpush.msra.mxu0 %v1387
    %v1389 = vand.u32 %v1026, 4294901760
    %1390 = vmatpush.msra.mxu0 %v1389
    %v1391 = vand.u32 %v1025, 4294901760
    %1392 = vmatpush.msra.mxu0 %v1391
    %v1393 = vand.u32 %v1024, 4294901760
    %1394 = vmatpush.msra.mxu0 %v1393
    %v1395 = vand.u32 %v1023, 4294901760
    %1396 = vmatpush.msra.mxu0 %v1395
    %v1397 = vand.u32 %v1022, 4294901760
    %1398 = vmatpush.msra.mxu0 %v1397
    %v1399 = vand.u32 %v1021, 4294901760
    %1400 = vmatpush.msra.mxu0 %v1399
    %v1401 = vand.u32 %v1020, 4294901760
    %1402 = vmatpush.msra.mxu0 %v1401
    %v1403 = vand.u32 %v1019, 4294901760
    %1404 = vmatpush.msra.mxu0 %v1403
    %v1405 = vand.u32 %v1018, 4294901760
    %1406 = vmatpush.msra.mxu0 %v1405
    %v1407 = vand.u32 %v1017, 4294901760
    %1408 = vmatpush.msra.mxu0 %v1407
    %v1409 = vand.u32 %v1016, 4294901760
    %1410 = vmatpush.msra.mxu0 %v1409
    %v1411 = vand.u32 %v1012, 4294901760
    %1412 = vmatmul.f32.gmra.mxu0 %v1411
    %v1413 = vpop.f32.mrf.mxu0
    %v1414 = vadd.f32 %v1373, %v1413
    %v1415 = vand.u32 %v1014, 4294901760
    %1416 = vmatmul.f32.gmra.mxu0 %v1415
    %v1417 = vpop.f32.mrf.mxu0
    %v1418 = vadd.f32 %v1377, %v1417
    %1419 = vdwg.mxu0
    %1420 = vmatpush.msra.mxu0 0.0
    %1421 = vmatpush.msra.mxu0 0.0
    %1422 = vmatpush.msra.mxu0 0.0
    %1423 = vmatpush.msra.mxu0 0.0
    %1424 = vmatpush.msra.mxu0 0.0
    %1425 = vmatpush.msra.mxu0 0.0
    %1426 = vmatpush.msra.mxu0 0.0
    %1427 = vmatpush.msra.mxu0 0.0
    %v1428 = vand.u32 %v1039, 4294901760
    %1429 = vmatpush.msra.mxu0 %v1428
    %v1430 = vand.u32 %v1038, 4294901760
    %1431 = vmatpush.msra.mxu0 %v1430
    %v1432 = vand.u32 %v1037, 4294901760
    %1433 = vmatpush.msra.mxu0 %v1432
    %v1434 = vand.u32 %v1036, 4294901760
    %1435 = vmatpush.msra.mxu0 %v1434
    %v1436 = vand.u32 %v1035, 4294901760
    %1437 = vmatpush.msra.mxu0 %v1436
    %v1438 = vand.u32 %v1034, 4294901760
    %1439 = vmatpush.msra.mxu0 %v1438
    %v1440 = vand.u32 %v1033, 4294901760
    %1441 = vmatpush.msra.mxu0 %v1440
    %v1442 = vand.u32 %v1032, 4294901760
    %1443 = vmatpush.msra.mxu0 %v1442
    %v1444 = vand.u32 %v1043, 4294901760
    %v1445 = vsub.f32 %v1043, %v1444
    %v1446 = vand.u32 %v1445, 4294901760
    %v1447 = vsub.f32 %v1445, %v1446
    %v1448 = vand.u32 %v1447, 4294901760
    %1449 = vmatmul.f32.gmra.mxu0 %v1448
    %v1450 = vpop.f32.mrf.mxu0
    %v1451 = vadd.f32 %v1414, %v1450
    %v1452 = vand.u32 %v1046, 4294901760
    %v1453 = vsub.f32 %v1046, %v1452
    %v1454 = vand.u32 %v1453, 4294901760
    %v1455 = vsub.f32 %v1453, %v1454
    %v1456 = vand.u32 %v1455, 4294901760
    %1457 = vmatmul.f32.gmra.mxu0 %v1456
    %v1458 = vpop.f32.mrf.mxu0
    %v1459 = vadd.f32 %v1418, %v1458
    %1460 = vdwg.mxu0
    %1461 = vmatpush.msra.mxu0 0.0
    %1462 = vmatpush.msra.mxu0 0.0
    %1463 = vmatpush.msra.mxu0 0.0
    %1464 = vmatpush.msra.mxu0 0.0
    %1465 = vmatpush.msra.mxu0 0.0
    %1466 = vmatpush.msra.mxu0 0.0
    %1467 = vmatpush.msra.mxu0 0.0
    %1468 = vmatpush.msra.mxu0 0.0
    %v1469 = vand.u32 %v1039, 4294901760
    %v1470 = vsub.f32 %v1039, %v1469
    %v1471 = vand.u32 %v1470, 4294901760
    %v1472 = vsub.f32 %v1470, %v1471
    %v1473 = vand.u32 %v1472, 4294901760
    %1474 = vmatpush.msra.mxu0 %v1473
    %v1475 = vand.u32 %v1038, 4294901760
    %v1476 = vsub.f32 %v1038, %v1475
    %v1477 = vand.u32 %v1476, 4294901760
    %v1478 = vsub.f32 %v1476, %v1477
    %v1479 = vand.u32 %v1478, 4294901760
    %1480 = vmatpush.msra.mxu0 %v1479
    %v1481 = vand.u32 %v1037, 4294901760
    %v1482 = vsub.f32 %v1037, %v1481
    %v1483 = vand.u32 %v1482, 4294901760
    %v1484 = vsub.f32 %v1482, %v1483
    %v1485 = vand.u32 %v1484, 4294901760
    %1486 = vmatpush.msra.mxu0 %v1485
    %v1487 = vand.u32 %v1036, 4294901760
    %v1488 = vsub.f32 %v1036, %v1487
    %v1489 = vand.u32 %v1488, 4294901760
    %v1490 = vsub.f32 %v1488, %v1489
    %v1491 = vand.u32 %v1490, 4294901760
    %1492 = vmatpush.msra.mxu0 %v1491
    %v1493 = vand.u32 %v1035, 4294901760
    %v1494 = vsub.f32 %v1035, %v1493
    %v1495 = vand.u32 %v1494, 4294901760
    %v1496 = vsub.f32 %v1494, %v1495
    %v1497 = vand.u32 %v1496, 4294901760
    %1498 = vmatpush.msra.mxu0 %v1497
    %v1499 = vand.u32 %v1034, 4294901760
    %v1500 = vsub.f32 %v1034, %v1499
    %v1501 = vand.u32 %v1500, 4294901760
    %v1502 = vsub.f32 %v1500, %v1501
    %v1503 = vand.u32 %v1502, 4294901760
    %1504 = vmatpush.msra.mxu0 %v1503
    %v1505 = vand.u32 %v1033, 4294901760
    %v1506 = vsub.f32 %v1033, %v1505
    %v1507 = vand.u32 %v1506, 4294901760
    %v1508 = vsub.f32 %v1506, %v1507
    %v1509 = vand.u32 %v1508, 4294901760
    %1510 = vmatpush.msra.mxu0 %v1509
    %v1511 = vand.u32 %v1032, 4294901760
    %v1512 = vsub.f32 %v1032, %v1511
    %v1513 = vand.u32 %v1512, 4294901760
    %v1514 = vsub.f32 %v1512, %v1513
    %v1515 = vand.u32 %v1514, 4294901760
    %1516 = vmatpush.msra.mxu0 %v1515
    %v1517 = vand.u32 %v1043, 4294901760
    %1518 = vmatmul.f32.gmra.mxu0 %v1517
    %v1519 = vpop.f32.mrf.mxu0
    %v1520 = vadd.f32 %v1451, %v1519
    %v1521 = vand.u32 %v1046, 4294901760
    %1522 = vmatmul.f32.gmra.mxu0 %v1521
    %v1523 = vpop.f32.mrf.mxu0
    %v1524 = vadd.f32 %v1459, %v1523
    %1525 = vdwg.mxu0
    %1526 = vmatpush.msra.mxu0 0.0
    %1527 = vmatpush.msra.mxu0 0.0
    %1528 = vmatpush.msra.mxu0 0.0
    %1529 = vmatpush.msra.mxu0 0.0
    %1530 = vmatpush.msra.mxu0 0.0
    %1531 = vmatpush.msra.mxu0 0.0
    %1532 = vmatpush.msra.mxu0 0.0
    %1533 = vmatpush.msra.mxu0 0.0
    %v1534 = vand.u32 %v1039, 4294901760
    %v1535 = vsub.f32 %v1039, %v1534
    %1536 = vmatpush.msra.mxu0 %v1535
    %v1537 = vand.u32 %v1038, 4294901760
    %v1538 = vsub.f32 %v1038, %v1537
    %1539 = vmatpush.msra.mxu0 %v1538
    %v1540 = vand.u32 %v1037, 4294901760
    %v1541 = vsub.f32 %v1037, %v1540
    %1542 = vmatpush.msra.mxu0 %v1541
    %v1543 = vand.u32 %v1036, 4294901760
    %v1544 = vsub.f32 %v1036, %v1543
    %1545 = vmatpush.msra.mxu0 %v1544
    %v1546 = vand.u32 %v1035, 4294901760
    %v1547 = vsub.f32 %v1035, %v1546
    %1548 = vmatpush.msra.mxu0 %v1547
    %v1549 = vand.u32 %v1034, 4294901760
    %v1550 = vsub.f32 %v1034, %v1549
    %1551 = vmatpush.msra.mxu0 %v1550
    %v1552 = vand.u32 %v1033, 4294901760
    %v1553 = vsub.f32 %v1033, %v1552
    %1554 = vmatpush.msra.mxu0 %v1553
    %v1555 = vand.u32 %v1032, 4294901760
    %v1556 = vsub.f32 %v1032, %v1555
    %1557 = vmatpush.msra.mxu0 %v1556
    %v1558 = vand.u32 %v1043, 4294901760
    %v1559 = vsub.f32 %v1043, %v1558
    %1560 = vmatmul.f32.gmra.mxu0 %v1559
    %v1561 = vpop.f32.mrf.mxu0
    %v1562 = vadd.f32 %v1520, %v1561
    %v1563 = vand.u32 %v1046, 4294901760
    %v1564 = vsub.f32 %v1046, %v1563
    %1565 = vmatmul.f32.gmra.mxu0 %v1564
    %v1566 = vpop.f32.mrf.mxu0
    %v1567 = vadd.f32 %v1524, %v1566
    %1568 = vdwg.mxu0
    %1569 = vmatpush.msra.mxu0 0.0
    %1570 = vmatpush.msra.mxu0 0.0
    %1571 = vmatpush.msra.mxu0 0.0
    %1572 = vmatpush.msra.mxu0 0.0
    %1573 = vmatpush.msra.mxu0 0.0
    %1574 = vmatpush.msra.mxu0 0.0
    %1575 = vmatpush.msra.mxu0 0.0
    %1576 = vmatpush.msra.mxu0 0.0
    %v1577 = vand.u32 %v1039, 4294901760
    %1578 = vmatpush.msra.mxu0 %v1577
    %v1579 = vand.u32 %v1038, 4294901760
    %1580 = vmatpush.msra.mxu0 %v1579
    %v1581 = vand.u32 %v1037, 4294901760
    %1582 = vmatpush.msra.mxu0 %v1581
    %v1583 = vand.u32 %v1036, 4294901760
    %1584 = vmatpush.msra.mxu0 %v1583
    %v1585 = vand.u32 %v1035, 4294901760
    %1586 = vmatpush.msra.mxu0 %v1585
    %v1587 = vand.u32 %v1034, 4294901760
    %1588 = vmatpush.msra.mxu0 %v1587
    %v1589 = vand.u32 %v1033, 4294901760
    %1590 = vmatpush.msra.mxu0 %v1589
    %v1591 = vand.u32 %v1032, 4294901760
    %1592 = vmatpush.msra.mxu0 %v1591
    %v1593 = vand.u32 %v1043, 4294901760
    %v1594 = vsub.f32 %v1043, %v1593
    %v1595 = vand.u32 %v1594, 4294901760
    %1596 = vmatmul.f32.gmra.mxu0 %v1595
    %v1597 = vpop.f32.mrf.mxu0
    %v1598 = vadd.f32 %v1562, %v1597
    %v1599 = vand.u32 %v1046, 4294901760
    %v1600 = vsub.f32 %v1046, %v1599
    %v1601 = vand.u32 %v1600, 4294901760
    %1602 = vmatmul.f32.gmra.mxu0 %v1601
    %v1603 = vpop.f32.mrf.mxu0
    %v1604 = vadd.f32 %v1567, %v1603
    %1605 = vdwg.mxu0
    %1606 = vmatpush.msra.mxu0 0.0
    %1607 = vmatpush.msra.mxu0 0.0
    %1608 = vmatpush.msra.mxu0 0.0
    %1609 = vmatpush.msra.mxu0 0.0
    %1610 = vmatpush.msra.mxu0 0.0
    %1611 = vmatpush.msra.mxu0 0.0
    %1612 = vmatpush.msra.mxu0 0.0
    %1613 = vmatpush.msra.mxu0 0.0
    %v1614 = vand.u32 %v1039, 4294901760
    %v1615 = vsub.f32 %v1039, %v1614
    %v1616 = vand.u32 %v1615, 4294901760
    %1617 = vmatpush.msra.mxu0 %v1616
    %v1618 = vand.u32 %v1038, 4294901760
    %v1619 = vsub.f32 %v1038, %v1618
    %v1620 = vand.u32 %v1619, 4294901760
    %1621 = vmatpush.msra.mxu0 %v1620
    %v1622 = vand.u32 %v1037, 4294901760
    %v1623 = vsub.f32 %v1037, %v1622
    %v1624 = vand.u32 %v1623, 4294901760
    %1625 = vmatpush.msra.mxu0 %v1624
    %v1626 = vand.u32 %v1036, 4294901760
    %v1627 = vsub.f32 %v1036, %v1626
    %v1628 = vand.u32 %v1627, 4294901760
    %1629 = vmatpush.msra.mxu0 %v1628
    %v1630 = vand.u32 %v1035, 4294901760
    %v1631 = vsub.f32 %v1035, %v1630
    %v1632 = vand.u32 %v1631, 4294901760
    %1633 = vmatpush.msra.mxu0 %v1632
    %v1634 = vand.u32 %v1034, 4294901760
    %v1635 = vsub.f32 %v1034, %v1634
    %v1636 = vand.u32 %v1635, 4294901760
    %1637 = vmatpush.msra.mxu0 %v1636
    %v1638 = vand.u32 %v1033, 4294901760
    %v1639 = vsub.f32 %v1033, %v1638
    %v1640 = vand.u32 %v1639, 4294901760
    %1641 = vmatpush.msra.mxu0 %v1640
    %v1642 = vand.u32 %v1032, 4294901760
    %v1643 = vsub.f32 %v1032, %v1642
    %v1644 = vand.u32 %v1643, 4294901760
    %1645 = vmatpush.msra.mxu0 %v1644
    %v1646 = vand.u32 %v1043, 4294901760
    %1647 = vmatmul.f32.gmra.mxu0 %v1646
    %v1648 = vpop.f32.mrf.mxu0
    %v1649 = vadd.f32 %v1598, %v1648
    %v1650 = vand.u32 %v1046, 4294901760
    %1651 = vmatmul.f32.gmra.mxu0 %v1650
    %v1652 = vpop.f32.mrf.mxu0
    %v1653 = vadd.f32 %v1604, %v1652
    %1654 = vdwg.mxu0
    %1655 = vmatpush.msra.mxu0 0.0
    %1656 = vmatpush.msra.mxu0 0.0
    %1657 = vmatpush.msra.mxu0 0.0
    %1658 = vmatpush.msra.mxu0 0.0
    %1659 = vmatpush.msra.mxu0 0.0
    %1660 = vmatpush.msra.mxu0 0.0
    %1661 = vmatpush.msra.mxu0 0.0
    %1662 = vmatpush.msra.mxu0 0.0
    %v1663 = vand.u32 %v1039, 4294901760
    %1664 = vmatpush.msra.mxu0 %v1663
    %v1665 = vand.u32 %v1038, 4294901760
    %1666 = vmatpush.msra.mxu0 %v1665
    %v1667 = vand.u32 %v1037, 4294901760
    %1668 = vmatpush.msra.mxu0 %v1667
    %v1669 = vand.u32 %v1036, 4294901760
    %1670 = vmatpush.msra.mxu0 %v1669
    %v1671 = vand.u32 %v1035, 4294901760
    %1672 = vmatpush.msra.mxu0 %v1671
    %v1673 = vand.u32 %v1034, 4294901760
    %1674 = vmatpush.msra.mxu0 %v1673
    %v1675 = vand.u32 %v1033, 4294901760
    %1676 = vmatpush.msra.mxu0 %v1675
    %v1677 = vand.u32 %v1032, 4294901760
    %1678 = vmatpush.msra.mxu0 %v1677
    %v1679 = vand.u32 %v1043, 4294901760
    %1680 = vmatmul.f32.gmra.mxu0 %v1679
    %v1681 = vpop.f32.mrf.mxu0
    %v1682 = vadd.f32 %v1649, %v1681
    %v1683 = vand.u32 %v1046, 4294901760
    %1684 = vmatmul.f32.gmra.mxu0 %v1683
    %v1685 = vpop.f32.mrf.mxu0
    %v1686 = vadd.f32 %v1653, %v1685
    %1687 = vdwg.mxu0
    %v1688 = vmax.f32 %v1682, 0.0
    %v1689 = vmax.f32 %v1686, 0.0
    %1692 = vrot.lane.b32.xlu0 %v1688, 64
    %v1693 = vpop.permute.xlu0 %1692
    %1694 = vrot.lane.b32.xlu0 %v1689, 64
    %v1695 = vpop.permute.xlu0 %1694
    %v1698 = vmax.f32 %v1688, %v1693
    %v1699 = vmax.f32 %v1689, %v1695
    %1700 = vst.msk [vmem:[#allocation5] sm:$0xff] %vm103, %v1698
    %1701 = vst.msk [vmem:[#allocation5 + $0x8] sm:$0xff] %vm103, %v1699
    %v1702 = vld [vmem:[#allocation5] ss:$8 sm:$0x3]
    %s1703 = scalar_lea.vmem [#allocation5], 1
    %v1704 = vld [vmem:[%s1703] ss:$8 sm:$0x3]
    %v1705 = vmax.f32 %v1702, %v1704
    %vm1706 = vcmask 517120
    %1707 = vst.msk [vmem:[#allocation6] sm:$0x3] %vm1706, %v1705
    %s1708 = scalar_lea.vmem [#allocation5], 2
    %v1709 = vld [vmem:[%s1708] ss:$8 sm:$0x3]
    %s1710 = scalar_lea.vmem [#allocation5], 3
    %v1711 = vld [vmem:[%s1710] ss:$8 sm:$0x3]
    %v1712 = vmax.f32 %v1709, %v1711
    %1714 = vrot.lane.b32.xlu0 %v1712, 64
    %v1715 = vpop.permute.xlu0 %1714
    %vm1717 = vcmask 1041920
    %1718 = vst.msk [vmem:[#allocation6] sm:$0x3] %vm1717, %v1715
    %s1719 = scalar_lea.vmem [#allocation5], 4
    %v1720 = vld [vmem:[%s1719] ss:$8 sm:$0x3]
    %s1721 = scalar_lea.vmem [#allocation5], 5
    %v1722 = vld [vmem:[%s1721] ss:$8 sm:$0x3]
    %v1723 = vmax.f32 %v1720, %v1722
    %1724 = vst.msk [vmem:[#allocation6 + $0x2] sm:$0x3] %vm1706, %v1723
    %s1725 = scalar_lea.vmem [#allocation5], 6
    %v1726 = vld [vmem:[%s1725] ss:$8 sm:$0x3]
    %s1727 = scalar_lea.vmem [#allocation5], 7
    %v1728 = vld [vmem:[%s1727] ss:$8 sm:$0x3]
    %v1729 = vmax.f32 %v1726, %v1728
    %1731 = vrot.lane.b32.xlu0 %v1729, 64
    %v1732 = vpop.permute.xlu0 %1731
    %1734 = vst.msk [vmem:[#allocation6 + $0x2] sm:$0x3] %vm1717, %v1732
    %v1735 = vld [vmem:[#allocation6] sm:$0xf]
    %v1736 = vld [vmem:[#allocation10 + $0x180] sm:$0xff]
    %v1737 = vld [vmem:[#allocation10 + $0x188] sm:$0xff]
    %v1738 = vld [vmem:[#allocation10 + $0x190] sm:$0xff]
    %v1739 = vld [vmem:[#allocation10 + $0x198] sm:$0xff]
    %v1740 = vld [vmem:[#allocation10 + $0x1a0] sm:$0xff]
    %v1741 = vld [vmem:[#allocation10 + $0x1a8] sm:$0xff]
    %v1742 = vld [vmem:[#allocation10 + $0x1b0] sm:$0xff]
    %v1743 = vld [vmem:[#allocation10 + $0x1b8] sm:$0xff]
    %v1744 = vld [vmem:[#allocation10 + $0x1c0] sm:$0xff]
    %v1745 = vld [vmem:[#allocation10 + $0x1c8] sm:$0xff]
    %v1746 = vld [vmem:[#allocation10 + $0x1d0] sm:$0xff]
    %v1747 = vld [vmem:[#allocation10 + $0x1d8] sm:$0xff]
    %v1748 = vld [vmem:[#allocation10 + $0x1e0] sm:$0xff]
    %v1749 = vld [vmem:[#allocation10 + $0x1e8] sm:$0xff]
    %v1750 = vld [vmem:[#allocation10 + $0x1f0] sm:$0xff]
    %v1751 = vld [vmem:[#allocation10 + $0x1f8] sm:$0xff]
    %v1752 = vld [vmem:[#allocation10 + $0x200] sm:$0xff]
    %v1753 = vld [vmem:[#allocation10 + $0x208] sm:$0xff]
    %v1754 = vld [vmem:[#allocation10 + $0x210] sm:$0xff]
    %v1755 = vld [vmem:[#allocation10 + $0x218] sm:$0xff]
    %v1756 = vld [vmem:[#allocation10 + $0x220] sm:$0xff]
    %v1757 = vld [vmem:[#allocation10 + $0x228] sm:$0xff]
    %v1758 = vld [vmem:[#allocation10 + $0x230] sm:$0xff]
    %v1759 = vld [vmem:[#allocation10 + $0x238] sm:$0xff]
    %v1760 = vld [vmem:[#allocation10 + $0x240] sm:$0xff]
    %v1761 = vld [vmem:[#allocation10 + $0x248] sm:$0xff]
    %v1762 = vld [vmem:[#allocation10 + $0x250] sm:$0xff]
    %v1763 = vld [vmem:[#allocation10 + $0x258] sm:$0xff]
    %v1764 = vld [vmem:[#allocation10 + $0x260] sm:$0xff]
    %v1765 = vld [vmem:[#allocation10 + $0x268] sm:$0xff]
    %v1766 = vld [vmem:[#allocation10 + $0x270] sm:$0xff]
    %v1767 = vld [vmem:[#allocation10 + $0x278] sm:$0xff]
    %v1768 = vld [vmem:[#allocation10 + $0x310] sm:$0x1]
    %v1769 = vperm.slane %v1768, 0
    %1771 = vst [vmem:[#allocation1] ss:$4 sm:$0xff] %v1735
    %v1772 = vld.sshfl [vmem:[#allocation1] sm:$0xff pattern:$0x73625140]
    %v1773 = vld.sshfl [vmem:[#allocation1 + $0x8] sm:$0xff pattern:$0x73625140]
    %v1776 = vand.u32 %v1751, 4294901760
    %1777 = vmatpush.msra.mxu0 %v1776
    %v1778 = vand.u32 %v1750, 4294901760
    %1779 = vmatpush.msra.mxu0 %v1778
    %v1780 = vand.u32 %v1749, 4294901760
    %1781 = vmatpush.msra.mxu0 %v1780
    %v1782 = vand.u32 %v1748, 4294901760
    %1783 = vmatpush.msra.mxu0 %v1782
    %v1784 = vand.u32 %v1747, 4294901760
    %1785 = vmatpush.msra.mxu0 %v1784
    %v1786 = vand.u32 %v1746, 4294901760
    %1787 = vmatpush.msra.mxu0 %v1786
    %v1788 = vand.u32 %v1745, 4294901760
    %1789 = vmatpush.msra.mxu0 %v1788
    %v1790 = vand.u32 %v1744, 4294901760
    %1791 = vmatpush.msra.mxu0 %v1790
    %v1792 = vand.u32 %v1743, 4294901760
    %1793 = vmatpush.msra.mxu0 %v1792
    %v1794 = vand.u32 %v1742, 4294901760
    %1795 = vmatpush.msra.mxu0 %v1794
    %v1796 = vand.u32 %v1741, 4294901760
    %1797 = vmatpush.msra.mxu0 %v1796
    %v1798 = vand.u32 %v1740, 4294901760
    %1799 = vmatpush.msra.mxu0 %v1798
    %v1800 = vand.u32 %v1739, 4294901760
    %1801 = vmatpush.msra.mxu0 %v1800
    %v1802 = vand.u32 %v1738, 4294901760
    %1803 = vmatpush.msra.mxu0 %v1802
    %v1804 = vand.u32 %v1737, 4294901760
    %1805 = vmatpush.msra.mxu0 %v1804
    %v1806 = vand.u32 %v1736, 4294901760
    %1807 = vmatpush.msra.mxu0 %v1806
    %v1808 = vand.u32 %v1772, 4294901760
    %v1809 = vsub.f32 %v1772, %v1808
    %v1810 = vand.u32 %v1809, 4294901760
    %v1811 = vsub.f32 %v1809, %v1810
    %v1812 = vand.u32 %v1811, 4294901760
    %1813 = vmatmul.f32.gmra.mxu0 %v1812
    %v1814 = vpop.f32.mrf.mxu0
    %v1815 = vadd.f32 %v1769, %v1814
    %1816 = vdwg.mxu0
    %v1817 = vand.u32 %v1751, 4294901760
    %v1818 = vsub.f32 %v1751, %v1817
    %v1819 = vand.u32 %v1818, 4294901760
    %v1820 = vsub.f32 %v1818, %v1819
    %v1821 = vand.u32 %v1820, 4294901760
    %1822 = vmatpush.msra.mxu0 %v1821
    %v1823 = vand.u32 %v1750, 4294901760
    %v1824 = vsub.f32 %v1750, %v1823
    %v1825 = vand.u32 %v1824, 4294901760
    %v1826 = vsub.f32 %v1824, %v1825
    %v1827 = vand.u32 %v1826, 4294901760
    %1828 = vmatpush.msra.mxu0 %v1827
    %v1829 = vand.u32 %v1749, 4294901760
    %v1830 = vsub.f32 %v1749, %v1829
    %v1831 = vand.u32 %v1830, 4294901760
    %v1832 = vsub.f32 %v1830, %v1831
    %v1833 = vand.u32 %v1832, 4294901760
    %1834 = vmatpush.msra.mxu0 %v1833
    %v1835 = vand.u32 %v1748, 4294901760
    %v1836 = vsub.f32 %v1748, %v1835
    %v1837 = vand.u32 %v1836, 4294901760
    %v1838 = vsub.f32 %v1836, %v1837
    %v1839 = vand.u32 %v1838, 4294901760
    %1840 = vmatpush.msra.mxu0 %v1839
    %v1841 = vand.u32 %v1747, 4294901760
    %v1842 = vsub.f32 %v1747, %v1841
    %v1843 = vand.u32 %v1842, 4294901760
    %v1844 = vsub.f32 %v1842, %v1843
    %v1845 = vand.u32 %v1844, 4294901760
    %1846 = vmatpush.msra.mxu0 %v1845
    %v1847 = vand.u32 %v1746, 4294901760
    %v1848 = vsub.f32 %v1746, %v1847
    %v1849 = vand.u32 %v1848, 4294901760
    %v1850 = vsub.f32 %v1848, %v1849
    %v1851 = vand.u32 %v1850, 4294901760
    %1852 = vmatpush.msra.mxu0 %v1851
    %v1853 = vand.u32 %v1745, 4294901760
    %v1854 = vsub.f32 %v1745, %v1853
    %v1855 = vand.u32 %v1854, 4294901760
    %v1856 = vsub.f32 %v1854, %v1855
    %v1857 = vand.u32 %v1856, 4294901760
    %1858 = vmatpush.msra.mxu0 %v1857
    %v1859 = vand.u32 %v1744, 4294901760
    %v1860 = vsub.f32 %v1744, %v1859
    %v1861 = vand.u32 %v1860, 4294901760
    %v1862 = vsub.f32 %v1860, %v1861
    %v1863 = vand.u32 %v1862, 4294901760
    %1864 = vmatpush.msra.mxu0 %v1863
    %v1865 = vand.u32 %v1743, 4294901760
    %v1866 = vsub.f32 %v1743, %v1865
    %v1867 = vand.u32 %v1866, 4294901760
    %v1868 = vsub.f32 %v1866, %v1867
    %v1869 = vand.u32 %v1868, 4294901760
    %1870 = vmatpush.msra.mxu0 %v1869
    %v1871 = vand.u32 %v1742, 4294901760
    %v1872 = vsub.f32 %v1742, %v1871
    %v1873 = vand.u32 %v1872, 4294901760
    %v1874 = vsub.f32 %v1872, %v1873
    %v1875 = vand.u32 %v1874, 4294901760
    %1876 = vmatpush.msra.mxu0 %v1875
    %v1877 = vand.u32 %v1741, 4294901760
    %v1878 = vsub.f32 %v1741, %v1877
    %v1879 = vand.u32 %v1878, 4294901760
    %v1880 = vsub.f32 %v1878, %v1879
    %v1881 = vand.u32 %v1880, 4294901760
    %1882 = vmatpush.msra.mxu0 %v1881
    %v1883 = vand.u32 %v1740, 4294901760
    %v1884 = vsub.f32 %v1740, %v1883
    %v1885 = vand.u32 %v1884, 4294901760
    %v1886 = vsub.f32 %v1884, %v1885
    %v1887 = vand.u32 %v1886, 4294901760
    %1888 = vmatpush.msra.mxu0 %v1887
    %v1889 = vand.u32 %v1739, 4294901760
    %v1890 = vsub.f32 %v1739, %v1889
    %v1891 = vand.u32 %v1890, 4294901760
    %v1892 = vsub.f32 %v1890, %v1891
    %v1893 = vand.u32 %v1892, 4294901760
    %1894 = vmatpush.msra.mxu0 %v1893
    %v1895 = vand.u32 %v1738, 4294901760
    %v1896 = vsub.f32 %v1738, %v1895
    %v1897 = vand.u32 %v1896, 4294901760
    %v1898 = vsub.f32 %v1896, %v1897
    %v1899 = vand.u32 %v1898, 4294901760
    %1900 = vmatpush.msra.mxu0 %v1899
    %v1901 = vand.u32 %v1737, 4294901760
    %v1902 = vsub.f32 %v1737, %v1901
    %v1903 = vand.u32 %v1902, 4294901760
    %v1904 = vsub.f32 %v1902, %v1903
    %v1905 = vand.u32 %v1904, 4294901760
    %1906 = vmatpush.msra.mxu0 %v1905
    %v1907 = vand.u32 %v1736, 4294901760
    %v1908 = vsub.f32 %v1736, %v1907
    %v1909 = vand.u32 %v1908, 4294901760
    %v1910 = vsub.f32 %v1908, %v1909
    %v1911 = vand.u32 %v1910, 4294901760
    %1912 = vmatpush.msra.mxu0 %v1911
    %v1913 = vand.u32 %v1772, 4294901760
    %1914 = vmatmul.f32.gmra.mxu0 %v1913
    %v1915 = vpop.f32.mrf.mxu0
    %v1916 = vadd.f32 %v1815, %v1915
    %1917 = vdwg.mxu0
    %v1918 = vand.u32 %v1751, 4294901760
    %v1919 = vsub.f32 %v1751, %v1918
    %1920 = vmatpush.msra.mxu0 %v1919
    %v1921 = vand.u32 %v1750, 4294901760
    %v1922 = vsub.f32 %v1750, %v1921
    %1923 = vmatpush.msra.mxu0 %v1922
    %v1924 = vand.u32 %v1749, 4294901760
    %v1925 = vsub.f32 %v1749, %v1924
    %1926 = vmatpush.msra.mxu0 %v1925
    %v1927 = vand.u32 %v1748, 4294901760
    %v1928 = vsub.f32 %v1748, %v1927
    %1929 = vmatpush.msra.mxu0 %v1928
    %v1930 = vand.u32 %v1747, 4294901760
    %v1931 = vsub.f32 %v1747, %v1930
    %1932 = vmatpush.msra.mxu0 %v1931
    %v1933 = vand.u32 %v1746, 4294901760
    %v1934 = vsub.f32 %v1746, %v1933
    %1935 = vmatpush.msra.mxu0 %v1934
    %v1936 = vand.u32 %v1745, 4294901760
    %v1937 = vsub.f32 %v1745, %v1936
    %1938 = vmatpush.msra.mxu0 %v1937
    %v1939 = vand.u32 %v1744, 4294901760
    %v1940 = vsub.f32 %v1744, %v1939
    %1941 = vmatpush.msra.mxu0 %v1940
    %v1942 = vand.u32 %v1743, 4294901760
    %v1943 = vsub.f32 %v1743, %v1942
    %1944 = vmatpush.msra.mxu0 %v1943
    %v1945 = vand.u32 %v1742, 4294901760
    %v1946 = vsub.f32 %v1742, %v1945
    %1947 = vmatpush.msra.mxu0 %v1946
    %v1948 = vand.u32 %v1741, 4294901760
    %v1949 = vsub.f32 %v1741, %v1948
    %1950 = vmatpush.msra.mxu0 %v1949
    %v1951 = vand.u32 %v1740, 4294901760
    %v1952 = vsub.f32 %v1740, %v1951
    %1953 = vmatpush.msra.mxu0 %v1952
    %v1954 = vand.u32 %v1739, 4294901760
    %v1955 = vsub.f32 %v1739, %v1954
    %1956 = vmatpush.msra.mxu0 %v1955
    %v1957 = vand.u32 %v1738, 4294901760
    %v1958 = vsub.f32 %v1738, %v1957
    %1959 = vmatpush.msra.mxu0 %v1958
    %v1960 = vand.u32 %v1737, 4294901760
    %v1961 = vsub.f32 %v1737, %v1960
    %1962 = vmatpush.msra.mxu0 %v1961
    %v1963 = vand.u32 %v1736, 4294901760
    %v1964 = vsub.f32 %v1736, %v1963
    %1965 = vmatpush.msra.mxu0 %v1964
    %v1966 = vand.u32 %v1772, 4294901760
    %v1967 = vsub.f32 %v1772, %v1966
    %1968 = vmatmul.f32.gmra.mxu0 %v1967
    %v1969 = vpop.f32.mrf.mxu0
    %v1970 = vadd.f32 %v1916, %v1969
    %1971 = vdwg.mxu0
    %v1972 = vand.u32 %v1751, 4294901760
    %1973 = vmatpush.msra.mxu0 %v1972
    %v1974 = vand.u32 %v1750, 4294901760
    %1975 = vmatpush.msra.mxu0 %v1974
    %v1976 = vand.u32 %v1749, 4294901760
    %1977 = vmatpush.msra.mxu0 %v1976
    %v1978 = vand.u32 %v1748, 4294901760
    %1979 = vmatpush.msra.mxu0 %v1978
    %v1980 = vand.u32 %v1747, 4294901760
    %1981 = vmatpush.msra.mxu0 %v1980
    %v1982 = vand.u32 %v1746, 4294901760
    %1983 = vmatpush.msra.mxu0 %v1982
    %v1984 = vand.u32 %v1745, 4294901760
    %1985 = vmatpush.msra.mxu0 %v1984
    %v1986 = vand.u32 %v1744, 4294901760
    %1987 = vmatpush.msra.mxu0 %v1986
    %v1988 = vand.u32 %v1743, 4294901760
    %1989 = vmatpush.msra.mxu0 %v1988
    %v1990 = vand.u32 %v1742, 4294901760
    %1991 = vmatpush.msra.mxu0 %v1990
    %v1992 = vand.u32 %v1741, 4294901760
    %1993 = vmatpush.msra.mxu0 %v1992
    %v1994 = vand.u32 %v1740, 4294901760
    %1995 = vmatpush.msra.mxu0 %v1994
    %v1996 = vand.u32 %v1739, 4294901760
    %1997 = vmatpush.msra.mxu0 %v1996
    %v1998 = vand.u32 %v1738, 4294901760
    %1999 = vmatpush.msra.mxu0 %v1998
    %v2000 = vand.u32 %v1737, 4294901760
    %2001 = vmatpush.msra.mxu0 %v2000
    %v2002 = vand.u32 %v1736, 4294901760
    %2003 = vmatpush.msra.mxu0 %v2002
    %v2004 = vand.u32 %v1772, 4294901760
    %v2005 = vsub.f32 %v1772, %v2004
    %v2006 = vand.u32 %v2005, 4294901760
    %2007 = vmatmul.f32.gmra.mxu0 %v2006
    %v2008 = vpop.f32.mrf.mxu0
    %v2009 = vadd.f32 %v1970, %v2008
    %2010 = vdwg.mxu0
    %v2011 = vand.u32 %v1751, 4294901760
    %v2012 = vsub.f32 %v1751, %v2011
    %v2013 = vand.u32 %v2012, 4294901760
    %2014 = vmatpush.msra.mxu0 %v2013
    %v2015 = vand.u32 %v1750, 4294901760
    %v2016 = vsub.f32 %v1750, %v2015
    %v2017 = vand.u32 %v2016, 4294901760
    %2018 = vmatpush.msra.mxu0 %v2017
    %v2019 = vand.u32 %v1749, 4294901760
    %v2020 = vsub.f32 %v1749, %v2019
    %v2021 = vand.u32 %v2020, 4294901760
    %2022 = vmatpush.msra.mxu0 %v2021
    %v2023 = vand.u32 %v1748, 4294901760
    %v2024 = vsub.f32 %v1748, %v2023
    %v2025 = vand.u32 %v2024, 4294901760
    %2026 = vmatpush.msra.mxu0 %v2025
    %v2027 = vand.u32 %v1747, 4294901760
    %v2028 = vsub.f32 %v1747, %v2027
    %v2029 = vand.u32 %v2028, 4294901760
    %2030 = vmatpush.msra.mxu0 %v2029
    %v2031 = vand.u32 %v1746, 4294901760
    %v2032 = vsub.f32 %v1746, %v2031
    %v2033 = vand.u32 %v2032, 4294901760
    %2034 = vmatpush.msra.mxu0 %v2033
    %v2035 = vand.u32 %v1745, 4294901760
    %v2036 = vsub.f32 %v1745, %v2035
    %v2037 = vand.u32 %v2036, 4294901760
    %2038 = vmatpush.msra.mxu0 %v2037
    %v2039 = vand.u32 %v1744, 4294901760
    %v2040 = vsub.f32 %v1744, %v2039
    %v2041 = vand.u32 %v2040, 4294901760
    %2042 = vmatpush.msra.mxu0 %v2041
    %v2043 = vand.u32 %v1743, 4294901760
    %v2044 = vsub.f32 %v1743, %v2043
    %v2045 = vand.u32 %v2044, 4294901760
    %2046 = vmatpush.msra.mxu0 %v2045
    %v2047 = vand.u32 %v1742, 4294901760
    %v2048 = vsub.f32 %v1742, %v2047
    %v2049 = vand.u32 %v2048, 4294901760
    %2050 = vmatpush.msra.mxu0 %v2049
    %v2051 = vand.u32 %v1741, 4294901760
    %v2052 = vsub.f32 %v1741, %v2051
    %v2053 = vand.u32 %v2052, 4294901760
    %2054 = vmatpush.msra.mxu0 %v2053
    %v2055 = vand.u32 %v1740, 4294901760
    %v2056 = vsub.f32 %v1740, %v2055
    %v2057 = vand.u32 %v2056, 4294901760
    %2058 = vmatpush.msra.mxu0 %v2057
    %v2059 = vand.u32 %v1739, 4294901760
    %v2060 = vsub.f32 %v1739, %v2059
    %v2061 = vand.u32 %v2060, 4294901760
    %2062 = vmatpush.msra.mxu0 %v2061
    %v2063 = vand.u32 %v1738, 4294901760
    %v2064 = vsub.f32 %v1738, %v2063
    %v2065 = vand.u32 %v2064, 4294901760
    %2066 = vmatpush.msra.mxu0 %v2065
    %v2067 = vand.u32 %v1737, 4294901760
    %v2068 = vsub.f32 %v1737, %v2067
    %v2069 = vand.u32 %v2068, 4294901760
    %2070 = vmatpush.msra.mxu0 %v2069
    %v2071 = vand.u32 %v1736, 4294901760
    %v2072 = vsub.f32 %v1736, %v2071
    %v2073 = vand.u32 %v2072, 4294901760
    %2074 = vmatpush.msra.mxu0 %v2073
    %v2075 = vand.u32 %v1772, 4294901760
    %2076 = vmatmul.f32.gmra.mxu0 %v2075
    %v2077 = vpop.f32.mrf.mxu0
    %v2078 = vadd.f32 %v2009, %v2077
    %2079 = vdwg.mxu0
    %v2080 = vand.u32 %v1751, 4294901760
    %2081 = vmatpush.msra.mxu0 %v2080
    %v2082 = vand.u32 %v1750, 4294901760
    %2083 = vmatpush.msra.mxu0 %v2082
    %v2084 = vand.u32 %v1749, 4294901760
    %2085 = vmatpush.msra.mxu0 %v2084
    %v2086 = vand.u32 %v1748, 4294901760
    %2087 = vmatpush.msra.mxu0 %v2086
    %v2088 = vand.u32 %v1747, 4294901760
    %2089 = vmatpush.msra.mxu0 %v2088
    %v2090 = vand.u32 %v1746, 4294901760
    %2091 = vmatpush.msra.mxu0 %v2090
    %v2092 = vand.u32 %v1745, 4294901760
    %2093 = vmatpush.msra.mxu0 %v2092
    %v2094 = vand.u32 %v1744, 4294901760
    %2095 = vmatpush.msra.mxu0 %v2094
    %v2096 = vand.u32 %v1743, 4294901760
    %2097 = vmatpush.msra.mxu0 %v2096
    %v2098 = vand.u32 %v1742, 4294901760
    %2099 = vmatpush.msra.mxu0 %v2098
    %v2100 = vand.u32 %v1741, 4294901760
    %2101 = vmatpush.msra.mxu0 %v2100
    %v2102 = vand.u32 %v1740, 4294901760
    %2103 = vmatpush.msra.mxu0 %v2102
    %v2104 = vand.u32 %v1739, 4294901760
    %2105 = vmatpush.msra.mxu0 %v2104
    %v2106 = vand.u32 %v1738, 4294901760
    %2107 = vmatpush.msra.mxu0 %v2106
    %v2108 = vand.u32 %v1737, 4294901760
    %2109 = vmatpush.msra.mxu0 %v2108
    %v2110 = vand.u32 %v1736, 4294901760
    %2111 = vmatpush.msra.mxu0 %v2110
    %v2112 = vand.u32 %v1772, 4294901760
    %2113 = vmatmul.f32.gmra.mxu0 %v2112
    %v2114 = vpop.f32.mrf.mxu0
    %v2115 = vadd.f32 %v2078, %v2114
    %2116 = vdwg.mxu0
    %v2117 = vand.u32 %v1767, 4294901760
    %2118 = vmatpush.msra.mxu0 %v2117
    %v2119 = vand.u32 %v1766, 4294901760
    %2120 = vmatpush.msra.mxu0 %v2119
    %v2121 = vand.u32 %v1765, 4294901760
    %2122 = vmatpush.msra.mxu0 %v2121
    %v2123 = vand.u32 %v1764, 4294901760
    %2124 = vmatpush.msra.mxu0 %v2123
    %v2125 = vand.u32 %v1763, 4294901760
    %2126 = vmatpush.msra.mxu0 %v2125
    %v2127 = vand.u32 %v1762, 4294901760
    %2128 = vmatpush.msra.mxu0 %v2127
    %v2129 = vand.u32 %v1761, 4294901760
    %2130 = vmatpush.msra.mxu0 %v2129
    %v2131 = vand.u32 %v1760, 4294901760
    %2132 = vmatpush.msra.mxu0 %v2131
    %v2133 = vand.u32 %v1759, 4294901760
    %2134 = vmatpush.msra.mxu0 %v2133
    %v2135 = vand.u32 %v1758, 4294901760
    %2136 = vmatpush.msra.mxu0 %v2135
    %v2137 = vand.u32 %v1757, 4294901760
    %2138 = vmatpush.msra.mxu0 %v2137
    %v2139 = vand.u32 %v1756, 4294901760
    %2140 = vmatpush.msra.mxu0 %v2139
    %v2141 = vand.u32 %v1755, 4294901760
    %2142 = vmatpush.msra.mxu0 %v2141
    %v2143 = vand.u32 %v1754, 4294901760
    %2144 = vmatpush.msra.mxu0 %v2143
    %v2145 = vand.u32 %v1753, 4294901760
    %2146 = vmatpush.msra.mxu0 %v2145
    %v2147 = vand.u32 %v1752, 4294901760
    %2148 = vmatpush.msra.mxu0 %v2147
    %v2149 = vand.u32 %v1773, 4294901760
    %v2150 = vsub.f32 %v1773, %v2149
    %v2151 = vand.u32 %v2150, 4294901760
    %v2152 = vsub.f32 %v2150, %v2151
    %v2153 = vand.u32 %v2152, 4294901760
    %2154 = vmatmul.f32.gmra.mxu0 %v2153
    %v2155 = vpop.f32.mrf.mxu0
    %v2156 = vadd.f32 %v2115, %v2155
    %2157 = vdwg.mxu0
    %v2158 = vand.u32 %v1767, 4294901760
    %v2159 = vsub.f32 %v1767, %v2158
    %v2160 = vand.u32 %v2159, 4294901760
    %v2161 = vsub.f32 %v2159, %v2160
    %v2162 = vand.u32 %v2161, 4294901760
    %2163 = vmatpush.msra.mxu0 %v2162
    %v2164 = vand.u32 %v1766, 4294901760
    %v2165 = vsub.f32 %v1766, %v2164
    %v2166 = vand.u32 %v2165, 4294901760
    %v2167 = vsub.f32 %v2165, %v2166
    %v2168 = vand.u32 %v2167, 4294901760
    %2169 = vmatpush.msra.mxu0 %v2168
    %v2170 = vand.u32 %v1765, 4294901760
    %v2171 = vsub.f32 %v1765, %v2170
    %v2172 = vand.u32 %v2171, 4294901760
    %v2173 = vsub.f32 %v2171, %v2172
    %v2174 = vand.u32 %v2173, 4294901760
    %2175 = vmatpush.msra.mxu0 %v2174
    %v2176 = vand.u32 %v1764, 4294901760
    %v2177 = vsub.f32 %v1764, %v2176
    %v2178 = vand.u32 %v2177, 4294901760
    %v2179 = vsub.f32 %v2177, %v2178
    %v2180 = vand.u32 %v2179, 4294901760
    %2181 = vmatpush.msra.mxu0 %v2180
    %v2182 = vand.u32 %v1763, 4294901760
    %v2183 = vsub.f32 %v1763, %v2182
    %v2184 = vand.u32 %v2183, 4294901760
    %v2185 = vsub.f32 %v2183, %v2184
    %v2186 = vand.u32 %v2185, 4294901760
    %2187 = vmatpush.msra.mxu0 %v2186
    %v2188 = vand.u32 %v1762, 4294901760
    %v2189 = vsub.f32 %v1762, %v2188
    %v2190 = vand.u32 %v2189, 4294901760
    %v2191 = vsub.f32 %v2189, %v2190
    %v2192 = vand.u32 %v2191, 4294901760
    %2193 = vmatpush.msra.mxu0 %v2192
    %v2194 = vand.u32 %v1761, 4294901760
    %v2195 = vsub.f32 %v1761, %v2194
    %v2196 = vand.u32 %v2195, 4294901760
    %v2197 = vsub.f32 %v2195, %v2196
    %v2198 = vand.u32 %v2197, 4294901760
    %2199 = vmatpush.msra.mxu0 %v2198
    %v2200 = vand.u32 %v1760, 4294901760
    %v2201 = vsub.f32 %v1760, %v2200
    %v2202 = vand.u32 %v2201, 4294901760
    %v2203 = vsub.f32 %v2201, %v2202
    %v2204 = vand.u32 %v2203, 4294901760
    %2205 = vmatpush.msra.mxu0 %v2204
    %v2206 = vand.u32 %v1759, 4294901760
    %v2207 = vsub.f32 %v1759, %v2206
    %v2208 = vand.u32 %v2207, 4294901760
    %v2209 = vsub.f32 %v2207, %v2208
    %v2210 = vand.u32 %v2209, 4294901760
    %2211 = vmatpush.msra.mxu0 %v2210
    %v2212 = vand.u32 %v1758, 4294901760
    %v2213 = vsub.f32 %v1758, %v2212
    %v2214 = vand.u32 %v2213, 4294901760
    %v2215 = vsub.f32 %v2213, %v2214
    %v2216 = vand.u32 %v2215, 4294901760
    %2217 = vmatpush.msra.mxu0 %v2216
    %v2218 = vand.u32 %v1757, 4294901760
    %v2219 = vsub.f32 %v1757, %v2218
    %v2220 = vand.u32 %v2219, 4294901760
    %v2221 = vsub.f32 %v2219, %v2220
    %v2222 = vand.u32 %v2221, 4294901760
    %2223 = vmatpush.msra.mxu0 %v2222
    %v2224 = vand.u32 %v1756, 4294901760
    %v2225 = vsub.f32 %v1756, %v2224
    %v2226 = vand.u32 %v2225, 4294901760
    %v2227 = vsub.f32 %v2225, %v2226
    %v2228 = vand.u32 %v2227, 4294901760
    %2229 = vmatpush.msra.mxu0 %v2228
    %v2230 = vand.u32 %v1755, 4294901760
    %v2231 = vsub.f32 %v1755, %v2230
    %v2232 = vand.u32 %v2231, 4294901760
    %v2233 = vsub.f32 %v2231, %v2232
    %v2234 = vand.u32 %v2233, 4294901760
    %2235 = vmatpush.msra.mxu0 %v2234
    %v2236 = vand.u32 %v1754, 4294901760
    %v2237 = vsub.f32 %v1754, %v2236
    %v2238 = vand.u32 %v2237, 4294901760
    %v2239 = vsub.f32 %v2237, %v2238
    %v2240 = vand.u32 %v2239, 4294901760
    %2241 = vmatpush.msra.mxu0 %v2240
    %v2242 = vand.u32 %v1753, 4294901760
    %v2243 = vsub.f32 %v1753, %v2242
    %v2244 = vand.u32 %v2243, 4294901760
    %v2245 = vsub.f32 %v2243, %v2244
    %v2246 = vand.u32 %v2245, 4294901760
    %2247 = vmatpush.msra.mxu0 %v2246
    %v2248 = vand.u32 %v1752, 4294901760
    %v2249 = vsub.f32 %v1752, %v2248
    %v2250 = vand.u32 %v2249, 4294901760
    %v2251 = vsub.f32 %v2249, %v2250
    %v2252 = vand.u32 %v2251, 4294901760
    %2253 = vmatpush.msra.mxu0 %v2252
    %v2254 = vand.u32 %v1773, 4294901760
    %2255 = vmatmul.f32.gmra.mxu0 %v2254
    %v2256 = vpop.f32.mrf.mxu0
    %v2257 = vadd.f32 %v2156, %v2256
    %2258 = vdwg.mxu0
    %v2259 = vand.u32 %v1767, 4294901760
    %v2260 = vsub.f32 %v1767, %v2259
    %2261 = vmatpush.msra.mxu0 %v2260
    %v2262 = vand.u32 %v1766, 4294901760
    %v2263 = vsub.f32 %v1766, %v2262
    %2264 = vmatpush.msra.mxu0 %v2263
    %v2265 = vand.u32 %v1765, 4294901760
    %v2266 = vsub.f32 %v1765, %v2265
    %2267 = vmatpush.msra.mxu0 %v2266
    %v2268 = vand.u32 %v1764, 4294901760
    %v2269 = vsub.f32 %v1764, %v2268
    %2270 = vmatpush.msra.mxu0 %v2269
    %v2271 = vand.u32 %v1763, 4294901760
    %v2272 = vsub.f32 %v1763, %v2271
    %2273 = vmatpush.msra.mxu0 %v2272
    %v2274 = vand.u32 %v1762, 4294901760
    %v2275 = vsub.f32 %v1762, %v2274
    %2276 = vmatpush.msra.mxu0 %v2275
    %v2277 = vand.u32 %v1761, 4294901760
    %v2278 = vsub.f32 %v1761, %v2277
    %2279 = vmatpush.msra.mxu0 %v2278
    %v2280 = vand.u32 %v1760, 4294901760
    %v2281 = vsub.f32 %v1760, %v2280
    %2282 = vmatpush.msra.mxu0 %v2281
    %v2283 = vand.u32 %v1759, 4294901760
    %v2284 = vsub.f32 %v1759, %v2283
    %2285 = vmatpush.msra.mxu0 %v2284
    %v2286 = vand.u32 %v1758, 4294901760
    %v2287 = vsub.f32 %v1758, %v2286
    %2288 = vmatpush.msra.mxu0 %v2287
    %v2289 = vand.u32 %v1757, 4294901760
    %v2290 = vsub.f32 %v1757, %v2289
    %2291 = vmatpush.msra.mxu0 %v2290
    %v2292 = vand.u32 %v1756, 4294901760
    %v2293 = vsub.f32 %v1756, %v2292
    %2294 = vmatpush.msra.mxu0 %v2293
    %v2295 = vand.u32 %v1755, 4294901760
    %v2296 = vsub.f32 %v1755, %v2295
    %2297 = vmatpush.msra.mxu0 %v2296
    %v2298 = vand.u32 %v1754, 4294901760
    %v2299 = vsub.f32 %v1754, %v2298
    %2300 = vmatpush.msra.mxu0 %v2299
    %v2301 = vand.u32 %v1753, 4294901760
    %v2302 = vsub.f32 %v1753, %v2301
    %2303 = vmatpush.msra.mxu0 %v2302
    %v2304 = vand.u32 %v1752, 4294901760
    %v2305 = vsub.f32 %v1752, %v2304
    %2306 = vmatpush.msra.mxu0 %v2305
    %v2307 = vand.u32 %v1773, 4294901760
    %v2308 = vsub.f32 %v1773, %v2307
    %2309 = vmatmul.f32.gmra.mxu0 %v2308
    %v2310 = vpop.f32.mrf.mxu0
    %v2311 = vadd.f32 %v2257, %v2310
    %2312 = vdwg.mxu0
    %v2313 = vand.u32 %v1767, 4294901760
    %2314 = vmatpush.msra.mxu0 %v2313
    %v2315 = vand.u32 %v1766, 4294901760
    %2316 = vmatpush.msra.mxu0 %v2315
    %v2317 = vand.u32 %v1765, 4294901760
    %2318 = vmatpush.msra.mxu0 %v2317
    %v2319 = vand.u32 %v1764, 4294901760
    %2320 = vmatpush.msra.mxu0 %v2319
    %v2321 = vand.u32 %v1763, 4294901760
    %2322 = vmatpush.msra.mxu0 %v2321
    %v2323 = vand.u32 %v1762, 4294901760
    %2324 = vmatpush.msra.mxu0 %v2323
    %v2325 = vand.u32 %v1761, 4294901760
    %2326 = vmatpush.msra.mxu0 %v2325
    %v2327 = vand.u32 %v1760, 4294901760
    %2328 = vmatpush.msra.mxu0 %v2327
    %v2329 = vand.u32 %v1759, 4294901760
    %2330 = vmatpush.msra.mxu0 %v2329
    %v2331 = vand.u32 %v1758, 4294901760
    %2332 = vmatpush.msra.mxu0 %v2331
    %v2333 = vand.u32 %v1757, 4294901760
    %2334 = vmatpush.msra.mxu0 %v2333
    %v2335 = vand.u32 %v1756, 4294901760
    %2336 = vmatpush.msra.mxu0 %v2335
    %v2337 = vand.u32 %v1755, 4294901760
    %2338 = vmatpush.msra.mxu0 %v2337
    %v2339 = vand.u32 %v1754, 4294901760
    %2340 = vmatpush.msra.mxu0 %v2339
    %v2341 = vand.u32 %v1753, 4294901760
    %2342 = vmatpush.msra.mxu0 %v2341
    %v2343 = vand.u32 %v1752, 4294901760
    %2344 = vmatpush.msra.mxu0 %v2343
    %v2345 = vand.u32 %v1773, 4294901760
    %v2346 = vsub.f32 %v1773, %v2345
    %v2347 = vand.u32 %v2346, 4294901760
    %2348 = vmatmul.f32.gmra.mxu0 %v2347
    %v2349 = vpop.f32.mrf.mxu0
    %v2350 = vadd.f32 %v2311, %v2349
    %2351 = vdwg.mxu0
    %v2352 = vand.u32 %v1767, 4294901760
    %v2353 = vsub.f32 %v1767, %v2352
    %v2354 = vand.u32 %v2353, 4294901760
    %2355 = vmatpush.msra.mxu0 %v2354
    %v2356 = vand.u32 %v1766, 4294901760
    %v2357 = vsub.f32 %v1766, %v2356
    %v2358 = vand.u32 %v2357, 4294901760
    %2359 = vmatpush.msra.mxu0 %v2358
    %v2360 = vand.u32 %v1765, 4294901760
    %v2361 = vsub.f32 %v1765, %v2360
    %v2362 = vand.u32 %v2361, 4294901760
    %2363 = vmatpush.msra.mxu0 %v2362
    %v2364 = vand.u32 %v1764, 4294901760
    %v2365 = vsub.f32 %v1764, %v2364
    %v2366 = vand.u32 %v2365, 4294901760
    %2367 = vmatpush.msra.mxu0 %v2366
    %v2368 = vand.u32 %v1763, 4294901760
    %v2369 = vsub.f32 %v1763, %v2368
    %v2370 = vand.u32 %v2369, 4294901760
    %2371 = vmatpush.msra.mxu0 %v2370
    %v2372 = vand.u32 %v1762, 4294901760
    %v2373 = vsub.f32 %v1762, %v2372
    %v2374 = vand.u32 %v2373, 4294901760
    %2375 = vmatpush.msra.mxu0 %v2374
    %v2376 = vand.u32 %v1761, 4294901760
    %v2377 = vsub.f32 %v1761, %v2376
    %v2378 = vand.u32 %v2377, 4294901760
    %2379 = vmatpush.msra.mxu0 %v2378
    %v2380 = vand.u32 %v1760, 4294901760
    %v2381 = vsub.f32 %v1760, %v2380
    %v2382 = vand.u32 %v2381, 4294901760
    %2383 = vmatpush.msra.mxu0 %v2382
    %v2384 = vand.u32 %v1759, 4294901760
    %v2385 = vsub.f32 %v1759, %v2384
    %v2386 = vand.u32 %v2385, 4294901760
    %2387 = vmatpush.msra.mxu0 %v2386
    %v2388 = vand.u32 %v1758, 4294901760
    %v2389 = vsub.f32 %v1758, %v2388
    %v2390 = vand.u32 %v2389, 4294901760
    %2391 = vmatpush.msra.mxu0 %v2390
    %v2392 = vand.u32 %v1757, 4294901760
    %v2393 = vsub.f32 %v1757, %v2392
    %v2394 = vand.u32 %v2393, 4294901760
    %2395 = vmatpush.msra.mxu0 %v2394
    %v2396 = vand.u32 %v1756, 4294901760
    %v2397 = vsub.f32 %v1756, %v2396
    %v2398 = vand.u32 %v2397, 4294901760
    %2399 = vmatpush.msra.mxu0 %v2398
    %v2400 = vand.u32 %v1755, 4294901760
    %v2401 = vsub.f32 %v1755, %v2400
    %v2402 = vand.u32 %v2401, 4294901760
    %2403 = vmatpush.msra.mxu0 %v2402
    %v2404 = vand.u32 %v1754, 4294901760
    %v2405 = vsub.f32 %v1754, %v2404
    %v2406 = vand.u32 %v2405, 4294901760
    %2407 = vmatpush.msra.mxu0 %v2406
    %v2408 = vand.u32 %v1753, 4294901760
    %v2409 = vsub.f32 %v1753, %v2408
    %v2410 = vand.u32 %v2409, 4294901760
    %2411 = vmatpush.msra.mxu0 %v2410
    %v2412 = vand.u32 %v1752, 4294901760
    %v2413 = vsub.f32 %v1752, %v2412
    %v2414 = vand.u32 %v2413, 4294901760
    %2415 = vmatpush.msra.mxu0 %v2414
    %v2416 = vand.u32 %v1773, 4294901760
    %2417 = vmatmul.f32.gmra.mxu0 %v2416
    %v2418 = vpop.f32.mrf.mxu0
    %v2419 = vadd.f32 %v2350, %v2418
    %2420 = vdwg.mxu0
    %v2421 = vand.u32 %v1767, 4294901760
    %2422 = vmatpush.msra.mxu0 %v2421
    %v2423 = vand.u32 %v1766, 4294901760
    %2424 = vmatpush.msra.mxu0 %v2423
    %v2425 = vand.u32 %v1765, 4294901760
    %2426 = vmatpush.msra.mxu0 %v2425
    %v2427 = vand.u32 %v1764, 4294901760
    %2428 = vmatpush.msra.mxu0 %v2427
    %v2429 = vand.u32 %v1763, 4294901760
    %2430 = vmatpush.msra.mxu0 %v2429
    %v2431 = vand.u32 %v1762, 4294901760
    %2432 = vmatpush.msra.mxu0 %v2431
    %v2433 = vand.u32 %v1761, 4294901760
    %2434 = vmatpush.msra.mxu0 %v2433
    %v2435 = vand.u32 %v1760, 4294901760
    %2436 = vmatpush.msra.mxu0 %v2435
    %v2437 = vand.u32 %v1759, 4294901760
    %2438 = vmatpush.msra.mxu0 %v2437
    %v2439 = vand.u32 %v1758, 4294901760
    %2440 = vmatpush.msra.mxu0 %v2439
    %v2441 = vand.u32 %v1757, 4294901760
    %2442 = vmatpush.msra.mxu0 %v2441
    %v2443 = vand.u32 %v1756, 4294901760
    %2444 = vmatpush.msra.mxu0 %v2443
    %v2445 = vand.u32 %v1755, 4294901760
    %2446 = vmatpush.msra.mxu0 %v2445
    %v2447 = vand.u32 %v1754, 4294901760
    %2448 = vmatpush.msra.mxu0 %v2447
    %v2449 = vand.u32 %v1753, 4294901760
    %2450 = vmatpush.msra.mxu0 %v2449
    %v2451 = vand.u32 %v1752, 4294901760
    %2452 = vmatpush.msra.mxu0 %v2451
    %v2453 = vand.u32 %v1773, 4294901760
    %2454 = vmatmul.f32.gmra.mxu0 %v2453
    %v2455 = vpop.f32.mrf.mxu0
    %v2456 = vadd.f32 %v2419, %v2455
    %2457 = vdwg.mxu0
    %v2458 = vmax.f32 %v2456, 0.0
    %v2459 = vld [vmem:[#allocation10 + $0x280] sm:$0xff]
    %v2460 = vld [vmem:[#allocation10 + $0x288] sm:$0xff]
    %v2461 = vld [vmem:[#allocation10 + $0x290] sm:$0xff]
    %v2462 = vld [vmem:[#allocation10 + $0x298] sm:$0xff]
    %v2463 = vld [vmem:[#allocation10 + $0x2a0] sm:$0xff]
    %v2464 = vld [vmem:[#allocation10 + $0x2a8] sm:$0xff]
    %v2465 = vld [vmem:[#allocation10 + $0x2b0] sm:$0xff]
    %v2466 = vld [vmem:[#allocation10 + $0x2b8] sm:$0xff]
    %v2467 = vld [vmem:[#allocation10 + $0x2c0] sm:$0xff]
    %v2468 = vld [vmem:[#allocation10 + $0x2c8] sm:$0xff]
    %v2469 = vld [vmem:[#allocation10 + $0x2d0] sm:$0xff]
    %v2470 = vld [vmem:[#allocation10 + $0x2d8] sm:$0xff]
    %v2471 = vld [vmem:[#allocation10 + $0x2e0] sm:$0xff]
    %v2472 = vld [vmem:[#allocation10 + $0x2e8] sm:$0xff]
    %v2473 = vld [vmem:[#allocation10 + $0x2f0] sm:$0xff]
    %v2474 = vld [vmem:[#allocation10 + $0x2f8] sm:$0xff]
    %v2475 = vld [vmem:[#allocation10 + $0x318] sm:$0x1]
    %v2476 = vperm.slane %v2475, 0
    %v2477 = vand.u32 %v2474, 4294901760
    %2478 = vmatpush.msra.mxu0 %v2477
    %v2479 = vand.u32 %v2473, 4294901760
    %2480 = vmatpush.msra.mxu0 %v2479
    %v2481 = vand.u32 %v2472, 4294901760
    %2482 = vmatpush.msra.mxu0 %v2481
    %v2483 = vand.u32 %v2471, 4294901760
    %2484 = vmatpush.msra.mxu0 %v2483
    %v2485 = vand.u32 %v2470, 4294901760
    %2486 = vmatpush.msra.mxu0 %v2485
    %v2487 = vand.u32 %v2469, 4294901760
    %2488 = vmatpush.msra.mxu0 %v2487
    %v2489 = vand.u32 %v2468, 4294901760
    %2490 = vmatpush.msra.mxu0 %v2489
    %v2491 = vand.u32 %v2467, 4294901760
    %2492 = vmatpush.msra.mxu0 %v2491
    %v2493 = vand.u32 %v2466, 4294901760
    %2494 = vmatpush.msra.mxu0 %v2493
    %v2495 = vand.u32 %v2465, 4294901760
    %2496 = vmatpush.msra.mxu0 %v2495
    %v2497 = vand.u32 %v2464, 4294901760
    %2498 = vmatpush.msra.mxu0 %v2497
    %v2499 = vand.u32 %v2463, 4294901760
    %2500 = vmatpush.msra.mxu0 %v2499
    %v2501 = vand.u32 %v2462, 4294901760
    %2502 = vmatpush.msra.mxu0 %v2501
    %v2503 = vand.u32 %v2461, 4294901760
    %2504 = vmatpush.msra.mxu0 %v2503
    %v2505 = vand.u32 %v2460, 4294901760
    %2506 = vmatpush.msra.mxu0 %v2505
    %v2507 = vand.u32 %v2459, 4294901760
    %2508 = vmatpush.msra.mxu0 %v2507
    %v2509 = vand.u32 %v2458, 4294901760
    %v2510 = vsub.f32 %v2458, %v2509
    %v2511 = vand.u32 %v2510, 4294901760
    %v2512 = vsub.f32 %v2510, %v2511
    %v2513 = vand.u32 %v2512, 4294901760
    %2514 = vmatmul.f32.gmra.mxu0 %v2513
    %v2515 = vpop.f32.mrf.mxu0
    %v2516 = vadd.f32 %v2476, %v2515
    %2517 = vdwg.mxu0
    %v2518 = vand.u32 %v2474, 4294901760
    %v2519 = vsub.f32 %v2474, %v2518
    %v2520 = vand.u32 %v2519, 4294901760
    %v2521 = vsub.f32 %v2519, %v2520
    %v2522 = vand.u32 %v2521, 4294901760
    %2523 = vmatpush.msra.mxu0 %v2522
    %v2524 = vand.u32 %v2473, 4294901760
    %v2525 = vsub.f32 %v2473, %v2524
    %v2526 = vand.u32 %v2525, 4294901760
    %v2527 = vsub.f32 %v2525, %v2526
    %v2528 = vand.u32 %v2527, 4294901760
    %2529 = vmatpush.msra.mxu0 %v2528
    %v2530 = vand.u32 %v2472, 4294901760
    %v2531 = vsub.f32 %v2472, %v2530
    %v2532 = vand.u32 %v2531, 4294901760
    %v2533 = vsub.f32 %v2531, %v2532
    %v2534 = vand.u32 %v2533, 4294901760
    %2535 = vmatpush.msra.mxu0 %v2534
    %v2536 = vand.u32 %v2471, 4294901760
    %v2537 = vsub.f32 %v2471, %v2536
    %v2538 = vand.u32 %v2537, 4294901760
    %v2539 = vsub.f32 %v2537, %v2538
    %v2540 = vand.u32 %v2539, 4294901760
    %2541 = vmatpush.msra.mxu0 %v2540
    %v2542 = vand.u32 %v2470, 4294901760
    %v2543 = vsub.f32 %v2470, %v2542
    %v2544 = vand.u32 %v2543, 4294901760
    %v2545 = vsub.f32 %v2543, %v2544
    %v2546 = vand.u32 %v2545, 4294901760
    %2547 = vmatpush.msra.mxu0 %v2546
    %v2548 = vand.u32 %v2469, 4294901760
    %v2549 = vsub.f32 %v2469, %v2548
    %v2550 = vand.u32 %v2549, 4294901760
    %v2551 = vsub.f32 %v2549, %v2550
    %v2552 = vand.u32 %v2551, 4294901760
    %2553 = vmatpush.msra.mxu0 %v2552
    %v2554 = vand.u32 %v2468, 4294901760
    %v2555 = vsub.f32 %v2468, %v2554
    %v2556 = vand.u32 %v2555, 4294901760
    %v2557 = vsub.f32 %v2555, %v2556
    %v2558 = vand.u32 %v2557, 4294901760
    %2559 = vmatpush.msra.mxu0 %v2558
    %v2560 = vand.u32 %v2467, 4294901760
    %v2561 = vsub.f32 %v2467, %v2560
    %v2562 = vand.u32 %v2561, 4294901760
    %v2563 = vsub.f32 %v2561, %v2562
    %v2564 = vand.u32 %v2563, 4294901760
    %2565 = vmatpush.msra.mxu0 %v2564
    %v2566 = vand.u32 %v2466, 4294901760
    %v2567 = vsub.f32 %v2466, %v2566
    %v2568 = vand.u32 %v2567, 4294901760
    %v2569 = vsub.f32 %v2567, %v2568
    %v2570 = vand.u32 %v2569, 4294901760
    %2571 = vmatpush.msra.mxu0 %v2570
    %v2572 = vand.u32 %v2465, 4294901760
    %v2573 = vsub.f32 %v2465, %v2572
    %v2574 = vand.u32 %v2573, 4294901760
    %v2575 = vsub.f32 %v2573, %v2574
    %v2576 = vand.u32 %v2575, 4294901760
    %2577 = vmatpush.msra.mxu0 %v2576
    %v2578 = vand.u32 %v2464, 4294901760
    %v2579 = vsub.f32 %v2464, %v2578
    %v2580 = vand.u32 %v2579, 4294901760
    %v2581 = vsub.f32 %v2579, %v2580
    %v2582 = vand.u32 %v2581, 4294901760
    %2583 = vmatpush.msra.mxu0 %v2582
    %v2584 = vand.u32 %v2463, 4294901760
    %v2585 = vsub.f32 %v2463, %v2584
    %v2586 = vand.u32 %v2585, 4294901760
    %v2587 = vsub.f32 %v2585, %v2586
    %v2588 = vand.u32 %v2587, 4294901760
    %2589 = vmatpush.msra.mxu0 %v2588
    %v2590 = vand.u32 %v2462, 4294901760
    %v2591 = vsub.f32 %v2462, %v2590
    %v2592 = vand.u32 %v2591, 4294901760
    %v2593 = vsub.f32 %v2591, %v2592
    %v2594 = vand.u32 %v2593, 4294901760
    %2595 = vmatpush.msra.mxu0 %v2594
    %v2596 = vand.u32 %v2461, 4294901760
    %v2597 = vsub.f32 %v2461, %v2596
    %v2598 = vand.u32 %v2597, 4294901760
    %v2599 = vsub.f32 %v2597, %v2598
    %v2600 = vand.u32 %v2599, 4294901760
    %2601 = vmatpush.msra.mxu0 %v2600
    %v2602 = vand.u32 %v2460, 4294901760
    %v2603 = vsub.f32 %v2460, %v2602
    %v2604 = vand.u32 %v2603, 4294901760
    %v2605 = vsub.f32 %v2603, %v2604
    %v2606 = vand.u32 %v2605, 4294901760
    %2607 = vmatpush.msra.mxu0 %v2606
    %v2608 = vand.u32 %v2459, 4294901760
    %v2609 = vsub.f32 %v2459, %v2608
    %v2610 = vand.u32 %v2609, 4294901760
    %v2611 = vsub.f32 %v2609, %v2610
    %v2612 = vand.u32 %v2611, 4294901760
    %2613 = vmatpush.msra.mxu0 %v2612
    %v2614 = vand.u32 %v2458, 4294901760
    %2615 = vmatmul.f32.gmra.mxu0 %v2614
    %v2616 = vpop.f32.mrf.mxu0
    %v2617 = vadd.f32 %v2516, %v2616
    %2618 = vdwg.mxu0
    %v2619 = vand.u32 %v2474, 4294901760
    %v2620 = vsub.f32 %v2474, %v2619
    %2621 = vmatpush.msra.mxu0 %v2620
    %v2622 = vand.u32 %v2473, 4294901760
    %v2623 = vsub.f32 %v2473, %v2622
    %2624 = vmatpush.msra.mxu0 %v2623
    %v2625 = vand.u32 %v2472, 4294901760
    %v2626 = vsub.f32 %v2472, %v2625
    %2627 = vmatpush.msra.mxu0 %v2626
    %v2628 = vand.u32 %v2471, 4294901760
    %v2629 = vsub.f32 %v2471, %v2628
    %2630 = vmatpush.msra.mxu0 %v2629
    %v2631 = vand.u32 %v2470, 4294901760
    %v2632 = vsub.f32 %v2470, %v2631
    %2633 = vmatpush.msra.mxu0 %v2632
    %v2634 = vand.u32 %v2469, 4294901760
    %v2635 = vsub.f32 %v2469, %v2634
    %2636 = vmatpush.msra.mxu0 %v2635
    %v2637 = vand.u32 %v2468, 4294901760
    %v2638 = vsub.f32 %v2468, %v2637
    %2639 = vmatpush.msra.mxu0 %v2638
    %v2640 = vand.u32 %v2467, 4294901760
    %v2641 = vsub.f32 %v2467, %v2640
    %2642 = vmatpush.msra.mxu0 %v2641
    %v2643 = vand.u32 %v2466, 4294901760
    %v2644 = vsub.f32 %v2466, %v2643
    %2645 = vmatpush.msra.mxu0 %v2644
    %v2646 = vand.u32 %v2465, 4294901760
    %v2647 = vsub.f32 %v2465, %v2646
    %2648 = vmatpush.msra.mxu0 %v2647
    %v2649 = vand.u32 %v2464, 4294901760
    %v2650 = vsub.f32 %v2464, %v2649
    %2651 = vmatpush.msra.mxu0 %v2650
    %v2652 = vand.u32 %v2463, 4294901760
    %v2653 = vsub.f32 %v2463, %v2652
    %2654 = vmatpush.msra.mxu0 %v2653
    %v2655 = vand.u32 %v2462, 4294901760
    %v2656 = vsub.f32 %v2462, %v2655
    %2657 = vmatpush.msra.mxu0 %v2656
    %v2658 = vand.u32 %v2461, 4294901760
    %v2659 = vsub.f32 %v2461, %v2658
    %2660 = vmatpush.msra.mxu0 %v2659
    %v2661 = vand.u32 %v2460, 4294901760
    %v2662 = vsub.f32 %v2460, %v2661
    %2663 = vmatpush.msra.mxu0 %v2662
    %v2664 = vand.u32 %v2459, 4294901760
    %v2665 = vsub.f32 %v2459, %v2664
    %2666 = vmatpush.msra.mxu0 %v2665
    %v2667 = vand.u32 %v2458, 4294901760
    %v2668 = vsub.f32 %v2458, %v2667
    %2669 = vmatmul.f32.gmra.mxu0 %v2668
    %v2670 = vpop.f32.mrf.mxu0
    %v2671 = vadd.f32 %v2617, %v2670
    %2672 = vdwg.mxu0
    %v2673 = vand.u32 %v2474, 4294901760
    %2674 = vmatpush.msra.mxu0 %v2673
    %v2675 = vand.u32 %v2473, 4294901760
    %2676 = vmatpush.msra.mxu0 %v2675
    %v2677 = vand.u32 %v2472, 4294901760
    %2678 = vmatpush.msra.mxu0 %v2677
    %v2679 = vand.u32 %v2471, 4294901760
    %2680 = vmatpush.msra.mxu0 %v2679
    %v2681 = vand.u32 %v2470, 4294901760
    %2682 = vmatpush.msra.mxu0 %v2681
    %v2683 = vand.u32 %v2469, 4294901760
    %2684 = vmatpush.msra.mxu0 %v2683
    %v2685 = vand.u32 %v2468, 4294901760
    %2686 = vmatpush.msra.mxu0 %v2685
    %v2687 = vand.u32 %v2467, 4294901760
    %2688 = vmatpush.msra.mxu0 %v2687
    %v2689 = vand.u32 %v2466, 4294901760
    %2690 = vmatpush.msra.mxu0 %v2689
    %v2691 = vand.u32 %v2465, 4294901760
    %2692 = vmatpush.msra.mxu0 %v2691
    %v2693 = vand.u32 %v2464, 4294901760
    %2694 = vmatpush.msra.mxu0 %v2693
    %v2695 = vand.u32 %v2463, 4294901760
    %2696 = vmatpush.msra.mxu0 %v2695
    %v2697 = vand.u32 %v2462, 4294901760
    %2698 = vmatpush.msra.mxu0 %v2697
    %v2699 = vand.u32 %v2461, 4294901760
    %2700 = vmatpush.msra.mxu0 %v2699
    %v2701 = vand.u32 %v2460, 4294901760
    %2702 = vmatpush.msra.mxu0 %v2701
    %v2703 = vand.u32 %v2459, 4294901760
    %2704 = vmatpush.msra.mxu0 %v2703
    %v2705 = vand.u32 %v2458, 4294901760
    %v2706 = vsub.f32 %v2458, %v2705
    %v2707 = vand.u32 %v2706, 4294901760
    %2708 = vmatmul.f32.gmra.mxu0 %v2707
    %v2709 = vpop.f32.mrf.mxu0
    %v2710 = vadd.f32 %v2671, %v2709
    %2711 = vdwg.mxu0
    %v2712 = vand.u32 %v2474, 4294901760
    %v2713 = vsub.f32 %v2474, %v2712
    %v2714 = vand.u32 %v2713, 4294901760
    %2715 = vmatpush.msra.mxu0 %v2714
    %v2716 = vand.u32 %v2473, 4294901760
    %v2717 = vsub.f32 %v2473, %v2716
    %v2718 = vand.u32 %v2717, 4294901760
    %2719 = vmatpush.msra.mxu0 %v2718
    %v2720 = vand.u32 %v2472, 4294901760
    %v2721 = vsub.f32 %v2472, %v2720
    %v2722 = vand.u32 %v2721, 4294901760
    %2723 = vmatpush.msra.mxu0 %v2722
    %v2724 = vand.u32 %v2471, 4294901760
    %v2725 = vsub.f32 %v2471, %v2724
    %v2726 = vand.u32 %v2725, 4294901760
    %2727 = vmatpush.msra.mxu0 %v2726
    %v2728 = vand.u32 %v2470, 4294901760
    %v2729 = vsub.f32 %v2470, %v2728
    %v2730 = vand.u32 %v2729, 4294901760
    %2731 = vmatpush.msra.mxu0 %v2730
    %v2732 = vand.u32 %v2469, 4294901760
    %v2733 = vsub.f32 %v2469, %v2732
    %v2734 = vand.u32 %v2733, 4294901760
    %2735 = vmatpush.msra.mxu0 %v2734
    %v2736 = vand.u32 %v2468, 4294901760
    %v2737 = vsub.f32 %v2468, %v2736
    %v2738 = vand.u32 %v2737, 4294901760
    %2739 = vmatpush.msra.mxu0 %v2738
    %v2740 = vand.u32 %v2467, 4294901760
    %v2741 = vsub.f32 %v2467, %v2740
    %v2742 = vand.u32 %v2741, 4294901760
    %2743 = vmatpush.msra.mxu0 %v2742
    %v2744 = vand.u32 %v2466, 4294901760
    %v2745 = vsub.f32 %v2466, %v2744
    %v2746 = vand.u32 %v2745, 4294901760
    %2747 = vmatpush.msra.mxu0 %v2746
    %v2748 = vand.u32 %v2465, 4294901760
    %v2749 = vsub.f32 %v2465, %v2748
    %v2750 = vand.u32 %v2749, 4294901760
    %2751 = vmatpush.msra.mxu0 %v2750
    %v2752 = vand.u32 %v2464, 4294901760
    %v2753 = vsub.f32 %v2464, %v2752
    %v2754 = vand.u32 %v2753, 4294901760
    %2755 = vmatpush.msra.mxu0 %v2754
    %v2756 = vand.u32 %v2463, 4294901760
    %v2757 = vsub.f32 %v2463, %v2756
    %v2758 = vand.u32 %v2757, 4294901760
    %2759 = vmatpush.msra.mxu0 %v2758
    %v2760 = vand.u32 %v2462, 4294901760
    %v2761 = vsub.f32 %v2462, %v2760
    %v2762 = vand.u32 %v2761, 4294901760
    %2763 = vmatpush.msra.mxu0 %v2762
    %v2764 = vand.u32 %v2461, 4294901760
    %v2765 = vsub.f32 %v2461, %v2764
    %v2766 = vand.u32 %v2765, 4294901760
    %2767 = vmatpush.msra.mxu0 %v2766
    %v2768 = vand.u32 %v2460, 4294901760
    %v2769 = vsub.f32 %v2460, %v2768
    %v2770 = vand.u32 %v2769, 4294901760
    %2771 = vmatpush.msra.mxu0 %v2770
    %v2772 = vand.u32 %v2459, 4294901760
    %v2773 = vsub.f32 %v2459, %v2772
    %v2774 = vand.u32 %v2773, 4294901760
    %2775 = vmatpush.msra.mxu0 %v2774
    %v2776 = vand.u32 %v2458, 4294901760
    %2777 = vmatmul.f32.gmra.mxu0 %v2776
    %v2778 = vpop.f32.mrf.mxu0
    %v2779 = vadd.f32 %v2710, %v2778
    %2780 = vdwg.mxu0
    %v2781 = vand.u32 %v2474, 4294901760
    %2782 = vmatpush.msra.mxu0 %v2781
    %v2783 = vand.u32 %v2473, 4294901760
    %2784 = vmatpush.msra.mxu0 %v2783
    %v2785 = vand.u32 %v2472, 4294901760
    %2786 = vmatpush.msra.mxu0 %v2785
    %v2787 = vand.u32 %v2471, 4294901760
    %2788 = vmatpush.msra.mxu0 %v2787
    %v2789 = vand.u32 %v2470, 4294901760
    %2790 = vmatpush.msra.mxu0 %v2789
    %v2791 = vand.u32 %v2469, 4294901760
    %2792 = vmatpush.msra.mxu0 %v2791
    %v2793 = vand.u32 %v2468, 4294901760
    %2794 = vmatpush.msra.mxu0 %v2793
    %v2795 = vand.u32 %v2467, 4294901760
    %2796 = vmatpush.msra.mxu0 %v2795
    %v2797 = vand.u32 %v2466, 4294901760
    %2798 = vmatpush.msra.mxu0 %v2797
    %v2799 = vand.u32 %v2465, 4294901760
    %2800 = vmatpush.msra.mxu0 %v2799
    %v2801 = vand.u32 %v2464, 4294901760
    %2802 = vmatpush.msra.mxu0 %v2801
    %v2803 = vand.u32 %v2463, 4294901760
    %2804 = vmatpush.msra.mxu0 %v2803
    %v2805 = vand.u32 %v2462, 4294901760
    %2806 = vmatpush.msra.mxu0 %v2805
    %v2807 = vand.u32 %v2461, 4294901760
    %2808 = vmatpush.msra.mxu0 %v2807
    %v2809 = vand.u32 %v2460, 4294901760
    %2810 = vmatpush.msra.mxu0 %v2809
    %v2811 = vand.u32 %v2459, 4294901760
    %2812 = vmatpush.msra.mxu0 %v2811
    %v2813 = vand.u32 %v2458, 4294901760
    %2814 = vmatmul.f32.gmra.mxu0 %v2813
    %v2815 = vpop.f32.mrf.mxu0
    %v2816 = vadd.f32 %v2779, %v2815
    %2817 = vdwg.mxu0
    %2818 = vst [vmem:[#allocation12] sm:$0x3] %v2816
    // Predicated region
    $region18: #{cnn_forward.1} parent=1 // pred_check
      _
    $region19: #{cnn_forward.1} parent=1 // pred_check_branch
      %2820 = sbr.rel (0) target = $region21
    $region20: #{cnn_forward.1} parent=1 // pred_region
      %2822 = vsyncadd [#allocation9], 0
      %s2824 = sshll.u32 [#allocation12], 4
      %s2825 = int_to_ptr.vmem [resolvable:$true] %s2824
      %s2826 = sshll.u32 %s2, 4
      %s2827 = int_to_ptr.hbm [resolvable:$true] %s2826
      %2829 = dma.vmem_to_hbm [thread:$0]  %s2825, 32, %s2827, [#allocation9]
    $region21: #{cnn_forward.1} parent=1 // pred_fallthru
      _
    // Predicated region
    $region22: #{cnn_forward.1} parent=1 // pred_check
      _
    $region23: #{cnn_forward.1} parent=1 // pred_check_branch
      %2831 = sbr.rel (0) target = $region25
    $region24: #{cnn_forward.1} parent=1 // pred_region
      %2833 = dma.done [#allocation9], 32
    $region25: #{cnn_forward.1} parent=1 // pred_fallthru
      _
    %2834 = vsyncpa [#allocation8], 1
    %2835 = vsyncpa [#allocation11], 1
    %2836 = vsyncpa [#allocation9], 1

</llo_original>
